<compile_context>
chip_gen: v5e
topology: v5e:2x2
jax: 0.10.0
libtpu: 0.0.40
codegen_flags: <defaults>
</compile_context>

<pallas_src>
import jax
import jax.numpy as jnp
from jax.experimental import pallas as pl
from jax.experimental.pallas import tpu as pltpu


def _nrb_kernel(x_ref,                       # (C, HW) f32   -- one image
                w1_ref, b1_ref,              # (n, C, C) bf16, (n, C, 1) f32
                w2_ref, b2_ref,              # (n, C, C) bf16, (n, C, 1) f32
                cw1_ref, cb1_ref,            # (n, Cr, C) f32, (n, Cr, 1) f32
                cw2_ref, cb2_ref,            # (n, C, Cr) f32, (n, C, 1) f32
                wt_ref, bt_ref,              # (C, C) bf16, (C, 1) f32
                o_ref):                      # (C, HW) f32
    n = w1_ref.shape[0]
    hw = x_ref.shape[-1]
    f32 = jnp.float32
    bf16 = jnp.bfloat16
    inv_hw = f32(1.0 / hw)

    x = x_ref[...]                           # carried activation, f32

    # n is small/static -> unrolled.  (See TODO at top for large n.)
    for i in range(n):
        c0 = x
        # conv1 (1x1) + ReLU : bf16 MXU matmul, f32 accumulate
        h = jnp.dot(w1_ref[i], x.astype(bf16),
                    preferred_element_type=f32) + b1_ref[i]
        h = jnp.maximum(h, 0.0)
        # conv2 (1x1)
        h = jnp.dot(w2_ref[i], h.astype(bf16),
                    preferred_element_type=f32) + b2_ref[i]
        # CALayer: per-image global average pool = lane-axis reduce (f32, XLU)
        y = jnp.sum(h, axis=-1, keepdims=True) * inv_hw                  # (C, 1)
        # squeeze/excite 1x1 convs on the pooled vector (tiny matmuls, f32)
        y = jnp.maximum(jnp.dot(cw1_ref[i], y, preferred_element_type=f32)
                        + cb1_ref[i], 0.0)                               # (Cr, 1)
        y = jax.nn.sigmoid(jnp.dot(cw2_ref[i], y, preferred_element_type=f32)
                           + cb2_ref[i])                                 # (C, 1)
        # gate applied as a broadcast multiply on the VPU + RB residual
        x = h * y + c0

    # tail conv (1x1) + outer residual; re-read the resident input buffer
    t = jnp.dot(wt_ref[...], x.astype(bf16),
                preferred_element_type=f32) + bt_ref[...]
    o_ref[...] = x_ref[...] + t


def nrb_forward(x_nchw, params):
    """x_nchw: (B, C, H, W) float32. params: dict of stacked weights (see init_params)."""
    B, C, H, W = x_nchw.shape
    HW = H * W

    # (B, C, HW) is just a reshape of NCHW -- no transpose, no extra HBM pass.
    x = x_nchw.reshape(B, C, HW).astype(jnp.float32)

    weight_args = (
        params["w1"], params["b1"],
        params["w2"], params["b2"],
        params["cw1"], params["cb1"],
        params["cw2"], params["cb2"],
        params["wt"], params["bt"],
    )

    def resident_spec(a):
        # Same block for every grid step -> fetched once, stays in VMEM.
        nd = a.ndim
        return pl.BlockSpec(a.shape, lambda b, _nd=nd: (0,) * _nd)

    # VMEM budget: 2x double-buffered input/output tiles + resident weights +
    # a handful of full-tile f32/bf16 intermediates; capped for v7x (64 MiB).
    tile_bytes = C * HW * 4
    weight_bytes = sum(int(a.size) * a.dtype.itemsize for a in weight_args)
    est = 4 * tile_bytes + 2 * weight_bytes + 8 * tile_bytes
    vmem_limit = int(min(max(est, 16 * 1024 * 1024), 48 * 1024 * 1024))

    x_spec = pl.BlockSpec((None, C, HW), lambda b: (b, 0, 0))
    out_spec = pl.BlockSpec((None, C, HW), lambda b: (b, 0, 0))

    out = pl.pallas_call(
        _nrb_kernel,
        out_shape=jax.ShapeDtypeStruct((B, C, HW), jnp.float32),
        grid_spec=pltpu.PrefetchScalarGridSpec(
            num_scalar_prefetch=0,
            grid=(B,),
            in_specs=[x_spec] + [resident_spec(a) for a in weight_args],
            out_specs=out_spec,
        ),
        compiler_params=pltpu.CompilerParams(
            # Batch axis is independent -> parallel (v7x megacore; harmless on
            # single-TC v5e/v6e).
            dimension_semantics=("parallel",),
            vmem_limit_bytes=vmem_limit,
        ),
    )(x, *weight_args)

    return out.reshape(B, C, H, W)


def init_params(key, n, filters, reduction=16):
    """Deterministic synthetic weights.

    PyTorch Conv2d(cin, cout, 1) weight is (cout, cin, 1, 1); stored here as
    (cout, cin) so the kernel computes W @ x directly in the (C, HW) layout.
    Conv weights are bfloat16 (MXU inputs); biases / CA weights stay f32.
    """
    C = filters
    Cr = max(C // reduction, 1)
    ks = jax.random.split(key, 10)
    s = 0.05
    f32 = jnp.float32
    return {
        "w1":  (s * jax.random.normal(ks[0], (n, C, C), f32)).astype(jnp.bfloat16),
        "b1":  s * jax.random.normal(ks[1], (n, C, 1), f32),
        "w2":  (s * jax.random.normal(ks[2], (n, C, C), f32)).astype(jnp.bfloat16),
        "b2":  s * jax.random.normal(ks[3], (n, C, 1), f32),
        "cw1": s * jax.random.normal(ks[4], (n, Cr, C), f32),
        "cb1": s * jax.random.normal(ks[5], (n, Cr, 1), f32),
        "cw2": s * jax.random.normal(ks[6], (n, C, Cr), f32),
        "cb2": s * jax.random.normal(ks[7], (n, C, 1), f32),
        "wt":  (s * jax.random.normal(ks[8], (C, C), f32)).astype(jnp.bfloat16),
        "bt":  s * jax.random.normal(ks[9], (C, 1), f32),
    }


def nrb_reference(x_nchw, params):
    """Pure-JAX f32 reference mirroring the PyTorch forward (uses the same
    bf16-valued conv weights upcast to f32)."""
    B, C, H, W = x_nchw.shape
    HW = H * W
    x = x_nchw.reshape(B, C, HW).astype(jnp.float32)
    x_in = x
    n = params["w1"].shape[0]
    for i in range(n):
        w1 = params["w1"][i].astype(jnp.float32)
        w2 = params["w2"][i].astype(jnp.float32)
        c0 = x
        h = jnp.maximum(jnp.einsum("oc,bcp->bop", w1, x) + params["b1"][i][None], 0.0)
        h = jnp.einsum("oc,bcp->bop", w2, h) + params["b2"][i][None]
        y = h.mean(axis=2, keepdims=True)                              # (B, C, 1)
        y = jnp.maximum(jnp.einsum("rc,bcp->brp", params["cw1"][i], y)
                        + params["cb1"][i][None], 0.0)                 # (B, Cr, 1)
        y = jax.nn.sigmoid(jnp.einsum("cr,brp->bcp", params["cw2"][i], y)
                           + params["cb2"][i][None])                   # (B, C, 1)
        x = h * y + c0
    wt = params["wt"].astype(jnp.float32)
    out = x_in + jnp.einsum("oc,bcp->bop", wt, x) + params["bt"][None]
    return out.reshape(B, C, H, W)


if __name__ == "__main__":
    key = jax.random.PRNGKey(0)
    k_x, k_p = jax.random.split(key)

    # filters=32, n=2 residual blocks, 16x16 spatial so HW is a multiple of 128
    B, C, H, W = 2, 32, 16, 16
    n_blocks = 2

    x = jax.random.normal(k_x, (B, C, H, W), jnp.float32)
    params = init_params(k_p, n_blocks, C, reduction=16)

    out = jax.block_until_ready(nrb_forward(x, params))
    ref = nrb_reference(x, params)

    assert out.shape == (B, C, H, W)
    assert not bool(jnp.any(jnp.isnan(out)))
    # bf16 matmul inputs (f32 accumulation) -> loosened tolerance vs f32 reference
    assert jnp.allclose(out, ref, atol=2e-2, rtol=2e-2), float(jnp.max(jnp.abs(out - ref)))

    print("KERNEL_OK")
</pallas_src>

<mosaic_0001>
module attributes {stable_mosaic.version = 11 : i64} {
  func.func @_nrb_kernel(%arg0: i32, %arg1: memref<1x32x256xf32, #tpu.memory_space<vmem>>, %arg2: memref<2x32x32xbf16, #tpu.memory_space<vmem>>, %arg3: memref<2x32x1xf32, #tpu.memory_space<vmem>>, %arg4: memref<2x32x32xbf16, #tpu.memory_space<vmem>>, %arg5: memref<2x32x1xf32, #tpu.memory_space<vmem>>, %arg6: memref<2x2x32xf32, #tpu.memory_space<vmem>>, %arg7: memref<2x2x1xf32, #tpu.memory_space<vmem>>, %arg8: memref<2x32x2xf32, #tpu.memory_space<vmem>>, %arg9: memref<2x32x1xf32, #tpu.memory_space<vmem>>, %arg10: memref<32x32xbf16, #tpu.memory_space<vmem>>, %arg11: memref<32x1xf32, #tpu.memory_space<vmem>>, %arg12: memref<1x32x256xf32, #tpu.memory_space<vmem>>) attributes {dimension_semantics = [#tpu.dimension_semantics<parallel>], iteration_bounds = array<i64: 2>, scalar_prefetch = 0 : i64, scratch_operands = 0 : i64, tpu.core_type = #tpu.core_type<tc>, window_params = [{transform_indices = @transform_0, window_bounds = array<i64: 1, 32, 256>}, {pipeline_mode = #tpu.pipeline_mode<synchronous>, transform_indices = @transform_1, window_bounds = array<i64: 2, 32, 32>}, {pipeline_mode = #tpu.pipeline_mode<synchronous>, transform_indices = @transform_2, window_bounds = array<i64: 2, 32, 1>}, {pipeline_mode = #tpu.pipeline_mode<synchronous>, transform_indices = @transform_3, window_bounds = array<i64: 2, 32, 32>}, {pipeline_mode = #tpu.pipeline_mode<synchronous>, transform_indices = @transform_4, window_bounds = array<i64: 2, 32, 1>}, {pipeline_mode = #tpu.pipeline_mode<synchronous>, transform_indices = @transform_5, window_bounds = array<i64: 2, 2, 32>}, {pipeline_mode = #tpu.pipeline_mode<synchronous>, transform_indices = @transform_6, window_bounds = array<i64: 2, 2, 1>}, {pipeline_mode = #tpu.pipeline_mode<synchronous>, transform_indices = @transform_7, window_bounds = array<i64: 2, 32, 2>}, {pipeline_mode = #tpu.pipeline_mode<synchronous>, transform_indices = @transform_8, window_bounds = array<i64: 2, 32, 1>}, {pipeline_mode = #tpu.pipeline_mode<synchronous>, transform_indices = @transform_9, window_bounds = array<i64: 32, 32>}, {pipeline_mode = #tpu.pipeline_mode<synchronous>, transform_indices = @transform_10, window_bounds = array<i64: 32, 1>}, {transform_indices = @transform_11, window_bounds = array<i64: 1, 32, 256>}]} {
    %c0 = arith.constant 0 : index
    %c0_0 = arith.constant 0 : index
    %c0_1 = arith.constant 0 : index
    %0 = vector.load %arg1[%c0, %c0_0, %c0_1] : memref<1x32x256xf32, #tpu.memory_space<vmem>>, vector<1x32x256xf32>
    %1 = vector.shape_cast %0 : vector<1x32x256xf32> to vector<32x256xf32>
    %c0_2 = arith.constant 0 : index
    %c0_3 = arith.constant 0 : index
    %c0_4 = arith.constant 0 : index
    %2 = vector.load %arg2[%c0_2, %c0_3, %c0_4] : memref<2x32x32xbf16, #tpu.memory_space<vmem>>, vector<1x32x32xbf16>
    %3 = vector.shape_cast %2 : vector<1x32x32xbf16> to vector<32x32xbf16>
    %4 = arith.truncf %1 : vector<32x256xf32> to vector<32x256xbf16>
    %cst = arith.constant dense<0.000000e+00> : vector<32x256xf32>
    %5 = tpu.matmul %3, %4, %cst {dimension_numbers = #tpu.dot_dimension_numbers<[1], [0], [0], [1], [0, 0, 1, 1], [], []>} : vector<32x32xbf16>, vector<32x256xbf16>, vector<32x256xf32> -> vector<32x256xf32>
    %c0_5 = arith.constant 0 : index
    %c0_6 = arith.constant 0 : index
    %c0_7 = arith.constant 0 : index
    %6 = vector.load %arg3[%c0_5, %c0_6, %c0_7] : memref<2x32x1xf32, #tpu.memory_space<vmem>>, vector<1x32x1xf32>
    %7 = vector.shape_cast %6 : vector<1x32x1xf32> to vector<32x1xf32>
    %8 = vector.broadcast %7 : vector<32x1xf32> to vector<32x256xf32>
    %9 = arith.addf %5, %8 : vector<32x256xf32>
    %cst_8 = arith.constant 0.000000e+00 : f32
    %10 = vector.broadcast %cst_8 : f32 to vector<32x256xf32>
    %11 = arith.maximumf %9, %10 : vector<32x256xf32>
    %c0_9 = arith.constant 0 : index
    %c0_10 = arith.constant 0 : index
    %c0_11 = arith.constant 0 : index
    %12 = vector.load %arg4[%c0_9, %c0_10, %c0_11] : memref<2x32x32xbf16, #tpu.memory_space<vmem>>, vector<1x32x32xbf16>
    %13 = vector.shape_cast %12 : vector<1x32x32xbf16> to vector<32x32xbf16>
    %14 = arith.truncf %11 : vector<32x256xf32> to vector<32x256xbf16>
    %cst_12 = arith.constant dense<0.000000e+00> : vector<32x256xf32>
    %15 = tpu.matmul %13, %14, %cst_12 {dimension_numbers = #tpu.dot_dimension_numbers<[1], [0], [0], [1], [0, 0, 1, 1], [], []>} : vector<32x32xbf16>, vector<32x256xbf16>, vector<32x256xf32> -> vector<32x256xf32>
    %c0_13 = arith.constant 0 : index
    %c0_14 = arith.constant 0 : index
    %c0_15 = arith.constant 0 : index
    %16 = vector.load %arg5[%c0_13, %c0_14, %c0_15] : memref<2x32x1xf32, #tpu.memory_space<vmem>>, vector<1x32x1xf32>
    %17 = vector.shape_cast %16 : vector<1x32x1xf32> to vector<32x1xf32>
    %18 = vector.broadcast %17 : vector<32x1xf32> to vector<32x256xf32>
    %19 = arith.addf %15, %18 : vector<32x256xf32>
    %cst_16 = arith.constant dense<0.000000e+00> : vector<32xf32>
    %20 = vector.multi_reduction <add>, %19, %cst_16 [1] : vector<32x256xf32> to vector<32xf32>
    %21 = vector.shape_cast %20 : vector<32xf32> to vector<32x1xf32>
    %cst_17 = arith.constant 3.906250e-03 : f32
    %22 = vector.broadcast %cst_17 : f32 to vector<32x1xf32>
    %23 = arith.mulf %21, %22 : vector<32x1xf32>
    %c0_18 = arith.constant 0 : index
    %c0_19 = arith.constant 0 : index
    %c0_20 = arith.constant 0 : index
    %24 = vector.load %arg6[%c0_18, %c0_19, %c0_20] : memref<2x2x32xf32, #tpu.memory_space<vmem>>, vector<1x2x32xf32>
    %25 = vector.shape_cast %24 : vector<1x2x32xf32> to vector<2x32xf32>
    %cst_21 = arith.constant dense<0.000000e+00> : vector<2x1xf32>
    %26 = tpu.matmul %25, %23, %cst_21 {dimension_numbers = #tpu.dot_dimension_numbers<[1], [0], [0], [1], [0, 0, 1, 1], [], []>} : vector<2x32xf32>, vector<32x1xf32>, vector<2x1xf32> -> vector<2x1xf32>
    %c0_22 = arith.constant 0 : index
    %c0_23 = arith.constant 0 : index
    %c0_24 = arith.constant 0 : index
    %27 = vector.load %arg7[%c0_22, %c0_23, %c0_24] : memref<2x2x1xf32, #tpu.memory_space<vmem>>, vector<1x2x1xf32>
    %28 = vector.shape_cast %27 : vector<1x2x1xf32> to vector<2x1xf32>
    %29 = arith.addf %26, %28 : vector<2x1xf32>
    %cst_25 = arith.constant 0.000000e+00 : f32
    %30 = vector.broadcast %cst_25 : f32 to vector<2x1xf32>
    %31 = arith.maximumf %29, %30 : vector<2x1xf32>
    %c0_26 = arith.constant 0 : index
    %c0_27 = arith.constant 0 : index
    %c0_28 = arith.constant 0 : index
    %32 = vector.load %arg8[%c0_26, %c0_27, %c0_28] : memref<2x32x2xf32, #tpu.memory_space<vmem>>, vector<1x32x2xf32>
    %33 = vector.shape_cast %32 : vector<1x32x2xf32> to vector<32x2xf32>
    %cst_29 = arith.constant dense<0.000000e+00> : vector<32x1xf32>
    %34 = tpu.matmul %33, %31, %cst_29 {dimension_numbers = #tpu.dot_dimension_numbers<[1], [0], [0], [1], [0, 0, 1, 1], [], []>} : vector<32x2xf32>, vector<2x1xf32>, vector<32x1xf32> -> vector<32x1xf32>
    %c0_30 = arith.constant 0 : index
    %c0_31 = arith.constant 0 : index
    %c0_32 = arith.constant 0 : index
    %35 = vector.load %arg9[%c0_30, %c0_31, %c0_32] : memref<2x32x1xf32, #tpu.memory_space<vmem>>, vector<1x32x1xf32>
    %36 = vector.shape_cast %35 : vector<1x32x1xf32> to vector<32x1xf32>
    %37 = arith.addf %34, %36 : vector<32x1xf32>
    %38 = arith.negf %37 : vector<32x1xf32>
    %39 = math.exp %38 : vector<32x1xf32>
    %cst_33 = arith.constant 1.000000e+00 : f32
    %40 = vector.broadcast %cst_33 : f32 to vector<32x1xf32>
    %41 = arith.addf %40, %39 : vector<32x1xf32>
    %42 = arith.divf %40, %41 : vector<32x1xf32>
    %43 = vector.broadcast %42 : vector<32x1xf32> to vector<32x256xf32>
    %44 = arith.mulf %19, %43 : vector<32x256xf32>
    %45 = arith.addf %44, %1 : vector<32x256xf32>
    %c1 = arith.constant 1 : index
    %c0_34 = arith.constant 0 : index
    %c0_35 = arith.constant 0 : index
    %46 = vector.load %arg2[%c1, %c0_34, %c0_35] : memref<2x32x32xbf16, #tpu.memory_space<vmem>>, vector<1x32x32xbf16>
    %47 = vector.shape_cast %46 : vector<1x32x32xbf16> to vector<32x32xbf16>
    %48 = arith.truncf %45 : vector<32x256xf32> to vector<32x256xbf16>
    %cst_36 = arith.constant dense<0.000000e+00> : vector<32x256xf32>
    %49 = tpu.matmul %47, %48, %cst_36 {dimension_numbers = #tpu.dot_dimension_numbers<[1], [0], [0], [1], [0, 0, 1, 1], [], []>} : vector<32x32xbf16>, vector<32x256xbf16>, vector<32x256xf32> -> vector<32x256xf32>
    %c1_37 = arith.constant 1 : index
    %c0_38 = arith.constant 0 : index
    %c0_39 = arith.constant 0 : index
    %50 = vector.load %arg3[%c1_37, %c0_38, %c0_39] : memref<2x32x1xf32, #tpu.memory_space<vmem>>, vector<1x32x1xf32>
    %51 = vector.shape_cast %50 : vector<1x32x1xf32> to vector<32x1xf32>
    %52 = vector.broadcast %51 : vector<32x1xf32> to vector<32x256xf32>
    %53 = arith.addf %49, %52 : vector<32x256xf32>
    %cst_40 = arith.constant 0.000000e+00 : f32
    %54 = vector.broadcast %cst_40 : f32 to vector<32x256xf32>
    %55 = arith.maximumf %53, %54 : vector<32x256xf32>
    %c1_41 = arith.constant 1 : index
    %c0_42 = arith.constant 0 : index
    %c0_43 = arith.constant 0 : index
    %56 = vector.load %arg4[%c1_41, %c0_42, %c0_43] : memref<2x32x32xbf16, #tpu.memory_space<vmem>>, vector<1x32x32xbf16>
    %57 = vector.shape_cast %56 : vector<1x32x32xbf16> to vector<32x32xbf16>
    %58 = arith.truncf %55 : vector<32x256xf32> to vector<32x256xbf16>
    %cst_44 = arith.constant dense<0.000000e+00> : vector<32x256xf32>
    %59 = tpu.matmul %57, %58, %cst_44 {dimension_numbers = #tpu.dot_dimension_numbers<[1], [0], [0], [1], [0, 0, 1, 1], [], []>} : vector<32x32xbf16>, vector<32x256xbf16>, vector<32x256xf32> -> vector<32x256xf32>
    %c1_45 = arith.constant 1 : index
    %c0_46 = arith.constant 0 : index
    %c0_47 = arith.constant 0 : index
    %60 = vector.load %arg5[%c1_45, %c0_46, %c0_47] : memref<2x32x1xf32, #tpu.memory_space<vmem>>, vector<1x32x1xf32>
    %61 = vector.shape_cast %60 : vector<1x32x1xf32> to vector<32x1xf32>
    %62 = vector.broadcast %61 : vector<32x1xf32> to vector<32x256xf32>
    %63 = arith.addf %59, %62 : vector<32x256xf32>
    %cst_48 = arith.constant dense<0.000000e+00> : vector<32xf32>
    %64 = vector.multi_reduction <add>, %63, %cst_48 [1] : vector<32x256xf32> to vector<32xf32>
    %65 = vector.shape_cast %64 : vector<32xf32> to vector<32x1xf32>
    %cst_49 = arith.constant 3.906250e-03 : f32
    %66 = vector.broadcast %cst_49 : f32 to vector<32x1xf32>
    %67 = arith.mulf %65, %66 : vector<32x1xf32>
    %c1_50 = arith.constant 1 : index
    %c0_51 = arith.constant 0 : index
    %c0_52 = arith.constant 0 : index
    %68 = vector.load %arg6[%c1_50, %c0_51, %c0_52] : memref<2x2x32xf32, #tpu.memory_space<vmem>>, vector<1x2x32xf32>
    %69 = vector.shape_cast %68 : vector<1x2x32xf32> to vector<2x32xf32>
    %cst_53 = arith.constant dense<0.000000e+00> : vector<2x1xf32>
    %70 = tpu.matmul %69, %67, %cst_53 {dimension_numbers = #tpu.dot_dimension_numbers<[1], [0], [0], [1], [0, 0, 1, 1], [], []>} : vector<2x32xf32>, vector<32x1xf32>, vector<2x1xf32> -> vector<2x1xf32>
    %c1_54 = arith.constant 1 : index
    %c0_55 = arith.constant 0 : index
    %c0_56 = arith.constant 0 : index
    %71 = vector.load %arg7[%c1_54, %c0_55, %c0_56] : memref<2x2x1xf32, #tpu.memory_space<vmem>>, vector<1x2x1xf32>
    %72 = vector.shape_cast %71 : vector<1x2x1xf32> to vector<2x1xf32>
    %73 = arith.addf %70, %72 : vector<2x1xf32>
    %cst_57 = arith.constant 0.000000e+00 : f32
    %74 = vector.broadcast %cst_57 : f32 to vector<2x1xf32>
    %75 = arith.maximumf %73, %74 : vector<2x1xf32>
    %c1_58 = arith.constant 1 : index
    %c0_59 = arith.constant 0 : index
    %c0_60 = arith.constant 0 : index
    %76 = vector.load %arg8[%c1_58, %c0_59, %c0_60] : memref<2x32x2xf32, #tpu.memory_space<vmem>>, vector<1x32x2xf32>
    %77 = vector.shape_cast %76 : vector<1x32x2xf32> to vector<32x2xf32>
    %cst_61 = arith.constant dense<0.000000e+00> : vector<32x1xf32>
    %78 = tpu.matmul %77, %75, %cst_61 {dimension_numbers = #tpu.dot_dimension_numbers<[1], [0], [0], [1], [0, 0, 1, 1], [], []>} : vector<32x2xf32>, vector<2x1xf32>, vector<32x1xf32> -> vector<32x1xf32>
    %c1_62 = arith.constant 1 : index
    %c0_63 = arith.constant 0 : index
    %c0_64 = arith.constant 0 : index
    %79 = vector.load %arg9[%c1_62, %c0_63, %c0_64] : memref<2x32x1xf32, #tpu.memory_space<vmem>>, vector<1x32x1xf32>
    %80 = vector.shape_cast %79 : vector<1x32x1xf32> to vector<32x1xf32>
    %81 = arith.addf %78, %80 : vector<32x1xf32>
    %82 = arith.negf %81 : vector<32x1xf32>
    %83 = math.exp %82 : vector<32x1xf32>
    %cst_65 = arith.constant 1.000000e+00 : f32
    %84 = vector.broadcast %cst_65 : f32 to vector<32x1xf32>
    %85 = arith.addf %84, %83 : vector<32x1xf32>
    %86 = arith.divf %84, %85 : vector<32x1xf32>
    %87 = vector.broadcast %86 : vector<32x1xf32> to vector<32x256xf32>
    %88 = arith.mulf %63, %87 : vector<32x256xf32>
    %89 = arith.addf %88, %45 : vector<32x256xf32>
    %c0_66 = arith.constant 0 : index
    %c0_67 = arith.constant 0 : index
    %90 = vector.load %arg10[%c0_66, %c0_67] : memref<32x32xbf16, #tpu.memory_space<vmem>>, vector<32x32xbf16>
    %91 = arith.truncf %89 : vector<32x256xf32> to vector<32x256xbf16>
    %cst_68 = arith.constant dense<0.000000e+00> : vector<32x256xf32>
    %92 = tpu.matmul %90, %91, %cst_68 {dimension_numbers = #tpu.dot_dimension_numbers<[1], [0], [0], [1], [0, 0, 1, 1], [], []>} : vector<32x32xbf16>, vector<32x256xbf16>, vector<32x256xf32> -> vector<32x256xf32>
    %c0_69 = arith.constant 0 : index
    %c0_70 = arith.constant 0 : index
    %93 = vector.load %arg11[%c0_69, %c0_70] : memref<32x1xf32, #tpu.memory_space<vmem>>, vector<32x1xf32>
    %94 = vector.broadcast %93 : vector<32x1xf32> to vector<32x256xf32>
    %95 = arith.addf %92, %94 : vector<32x256xf32>
    %c0_71 = arith.constant 0 : index
    %c0_72 = arith.constant 0 : index
    %c0_73 = arith.constant 0 : index
    %96 = vector.load %arg1[%c0_71, %c0_72, %c0_73] : memref<1x32x256xf32, #tpu.memory_space<vmem>>, vector<1x32x256xf32>
    %97 = vector.shape_cast %96 : vector<1x32x256xf32> to vector<32x256xf32>
    %98 = arith.addf %97, %95 : vector<32x256xf32>
    %c0_74 = arith.constant 0 : index
    %c0_75 = arith.constant 0 : index
    %c0_76 = arith.constant 0 : index
    %99 = vector.load %arg12[%c0_74, %c0_75, %c0_76] : memref<1x32x256xf32, #tpu.memory_space<vmem>>, vector<1x32x256xf32>
    %100 = vector.shape_cast %99 : vector<1x32x256xf32> to vector<32x256xf32>
    %101 = vector.shape_cast %98 : vector<32x256xf32> to vector<1x32x256xf32>
    tpu.vector_store %arg12[%c0_74, %c0_75, %c0_76], %101 {strides = array<i32>} : memref<1x32x256xf32, #tpu.memory_space<vmem>>, vector<1x32x256xf32>,
    return
  }
  func.func @transform_0(%arg0: i32) -> (i32, i32, i32) {
    %c0_i32 = arith.constant 0 : i32
    %c0_i32_0 = arith.constant 0 : i32
    %c0_i32_1 = arith.constant 0 : i32
    return %arg0, %c0_i32, %c0_i32_0 : i32, i32, i32
  }
  func.func @transform_1(%arg0: i32) -> (i32, i32, i32) {
    %c0_i32 = arith.constant 0 : i32
    %c0_i32_0 = arith.constant 0 : i32
    %c0_i32_1 = arith.constant 0 : i32
    %c0_i32_2 = arith.constant 0 : i32
    return %c0_i32, %c0_i32_0, %c0_i32_1 : i32, i32, i32
  }
  func.func @transform_2(%arg0: i32) -> (i32, i32, i32) {
    %c0_i32 = arith.constant 0 : i32
    %c0_i32_0 = arith.constant 0 : i32
    %c0_i32_1 = arith.constant 0 : i32
    %c0_i32_2 = arith.constant 0 : i32
    return %c0_i32, %c0_i32_0, %c0_i32_1 : i32, i32, i32
  }
  func.func @transform_3(%arg0: i32) -> (i32, i32, i32) {
    %c0_i32 = arith.constant 0 : i32
    %c0_i32_0 = arith.constant 0 : i32
    %c0_i32_1 = arith.constant 0 : i32
    %c0_i32_2 = arith.constant 0 : i32
    return %c0_i32, %c0_i32_0, %c0_i32_1 : i32, i32, i32
  }
  func.func @transform_4(%arg0: i32) -> (i32, i32, i32) {
    %c0_i32 = arith.constant 0 : i32
    %c0_i32_0 = arith.constant 0 : i32
    %c0_i32_1 = arith.constant 0 : i32
    %c0_i32_2 = arith.constant 0 : i32
    return %c0_i32, %c0_i32_0, %c0_i32_1 : i32, i32, i32
  }
  func.func @transform_5(%arg0: i32) -> (i32, i32, i32) {
    %c0_i32 = arith.constant 0 : i32
    %c0_i32_0 = arith.constant 0 : i32
    %c0_i32_1 = arith.constant 0 : i32
    %c0_i32_2 = arith.constant 0 : i32
    return %c0_i32, %c0_i32_0, %c0_i32_1 : i32, i32, i32
  }
  func.func @transform_6(%arg0: i32) -> (i32, i32, i32) {
    %c0_i32 = arith.constant 0 : i32
    %c0_i32_0 = arith.constant 0 : i32
    %c0_i32_1 = arith.constant 0 : i32
    %c0_i32_2 = arith.constant 0 : i32
    return %c0_i32, %c0_i32_0, %c0_i32_1 : i32, i32, i32
  }
  func.func @transform_7(%arg0: i32) -> (i32, i32, i32) {
    %c0_i32 = arith.constant 0 : i32
    %c0_i32_0 = arith.constant 0 : i32
    %c0_i32_1 = arith.constant 0 : i32
    %c0_i32_2 = arith.constant 0 : i32
    return %c0_i32, %c0_i32_0, %c0_i32_1 : i32, i32, i32
  }
  func.func @transform_8(%arg0: i32) -> (i32, i32, i32) {
    %c0_i32 = arith.constant 0 : i32
    %c0_i32_0 = arith.constant 0 : i32
    %c0_i32_1 = arith.constant 0 : i32
    %c0_i32_2 = arith.constant 0 : i32
    return %c0_i32, %c0_i32_0, %c0_i32_1 : i32, i32, i32
  }
  func.func @transform_9(%arg0: i32) -> (i32, i32) {
    %c0_i32 = arith.constant 0 : i32
    %c0_i32_0 = arith.constant 0 : i32
    %c0_i32_1 = arith.constant 0 : i32
    return %c0_i32, %c0_i32_0 : i32, i32
  }
  func.func @transform_10(%arg0: i32) -> (i32, i32) {
    %c0_i32 = arith.constant 0 : i32
    %c0_i32_0 = arith.constant 0 : i32
    %c0_i32_1 = arith.constant 0 : i32
    return %c0_i32, %c0_i32_0 : i32, i32
  }
  func.func @transform_11(%arg0: i32) -> (i32, i32, i32) {
    %c0_i32 = arith.constant 0 : i32
    %c0_i32_0 = arith.constant 0 : i32
    %c0_i32_1 = arith.constant 0 : i32
    return %arg0, %c0_i32, %c0_i32_0 : i32, i32, i32
  }
}

</mosaic_0001>

<llo_original>
// kernel: tpu_custom_call.1
$region0: #{tpu_custom_call.1}
  #allocation0 [shape = 'u32[]', space=smem, size = 0x4, offset = 0x4, fixed_abs, tag = 'smem constant byte address 0x4 - core index']
  #allocation1 [shape = 'u32[72,128]{1,0:T(1,128)}', space=vmem, size = 0x9000, scoped, tag = 'internal scratch']
  %s0 = inlined_call_operand.vmem [shape: f32[2,32,256], index: 0, kind: input, shape index: {}]
  %s1 = inlined_call_operand.vmem [shape: bf16[2,32,32], index: 1, kind: input, shape index: {}]
  %s2 = inlined_call_operand.vmem [shape: f32[2,32,1], index: 2, kind: input, shape index: {}]
  %s3 = inlined_call_operand.vmem [shape: bf16[2,32,32], index: 3, kind: input, shape index: {}]
  %s4 = inlined_call_operand.vmem [shape: f32[2,32,1], index: 4, kind: input, shape index: {}]
  %s5 = inlined_call_operand.vmem [shape: f32[2,2,32], index: 5, kind: input, shape index: {}]
  %s6 = inlined_call_operand.vmem [shape: f32[2,2,1], index: 6, kind: input, shape index: {}]
  %s7 = inlined_call_operand.vmem [shape: f32[2,32,2], index: 7, kind: input, shape index: {}]
  %s8 = inlined_call_operand.vmem [shape: f32[2,32,1], index: 8, kind: input, shape index: {}]
  %s9 = inlined_call_operand.vmem [shape: bf16[32,32], index: 9, kind: input, shape index: {}]
  %s10 = inlined_call_operand.vmem [shape: f32[32,1], index: 10, kind: input, shape index: {}]
  %s11 = inlined_call_operand.hbm [shape: f32[2,32,256], index: 11, kind: output, shape index: {}]
  %s12 = sld [smem:[#allocation0]]
  $region77: #{tpu_custom_call.1} parent=0
    _
  %s14 = ssub.s32 1, %s12
  %s15 = scalar_select 0, %s14, %s12
  $region1: #{tpu_custom_call.1} parent=0
    #allocation2 [shape = 'u8[65536]{0}', space=vmem, size = 0x10000, scoped, tag = 'output window, operand 0']
    #allocation3 [shape = 's32[2]{0}', space=sflag, size = 0x8, scoped, tag = 'scoped memory for tpu_custom_call.1']
    %16 = vsyncpa [#allocation3], 0
    %s17 = scalar_lea.sflag [#allocation3], 1
    %18 = vsyncpa %s17, 0
    loop: start=0, step=1, limit=4
    $region2: #{tpu_custom_call.1} parent=1 // loop_pre_header
      _
    $region3: #{tpu_custom_call.1} parent=1 // loop_header
      %s20 = sphi 0, %s24
      %p21 = scmp.ge.s32.totalorder %s20, 4
      %s30 = sphi 0, %s32
      %s33 = sphi 0, %s30
      %s34 = sphi 0, %s33
      %s50 = sphi 0, %s34
      %s54 = sphi 0, %s54
      %s56 = sphi 0, %s54
      %s57 = sphi 0, %s56
      %s71 = sphi 0, %s57
      %s75 = sphi 0, %s75
      %s77 = sphi 0, %s75
      %s78 = sphi 0, %s77
      %s92 = sphi 0, %s78
      %s96 = sphi 0, %s96
      %s98 = sphi 0, %s96
      %s99 = sphi 0, %s98
      %s113 = sphi 0, %s99
      %s117 = sphi 0, %s117
      %s119 = sphi 0, %s117
      %s120 = sphi 0, %s119
      %s134 = sphi 0, %s120
      %s138 = sphi 0, %s138
      %s140 = sphi 0, %s138
      %s141 = sphi 0, %s140
      %s155 = sphi 0, %s141
      %s159 = sphi 0, %s159
      %s161 = sphi 0, %s159
      %s162 = sphi 0, %s161
      %s176 = sphi 0, %s162
      %s180 = sphi 0, %s180
      %s182 = sphi 0, %s180
      %s183 = sphi 0, %s182
      %s197 = sphi 0, %s183
      %s201 = sphi 0, %s201
      %s203 = sphi 0, %s201
      %s204 = sphi 0, %s203
      %s218 = sphi 0, %s204
      %s222 = sphi 0, %s222
      %s224 = sphi 0, %s222
      %s225 = sphi 0, %s224
      %s239 = sphi 0, %s225
      %s243 = sphi 0, %s243
      %s245 = sphi 0, %s243
      %s246 = sphi 0, %s245
      %s260 = sphi 0, %s246
      %s266 = sphi 0, %s268
      %s269 = sphi 0, %s266
      %s270 = sphi 0, %s269
      %s286 = sphi 0, %s270
    $region4: #{tpu_custom_call.1} parent=1 // loop_header_branch
      %23 = sbr.rel (%p21) target = $region8
    $region5: #{tpu_custom_call.1} parent=1 // loop_body
      %s25 = ssub.s32 %s20, 1
      %s26 = ssub.s32 %s20, 2
      %s27 = sadd.s32 %s20, 1
      %s28 = ssub.s32 %s20, %s27
      %p29 = scmp.eq.s32.totalorder %s28, 0
      %s31 = sadd.s32 %s30, 1
      %s32 = scalar_select %p29, %s30, %s31
      %p35 = pneg %p29
      %p36 = scmp.eq.s32.totalorder %s20, 1
      %p37 = por %p35, %p36
      %p38 = scmp.ne.s32.totalorder %s30, %s33
      %p39 = scmp.eq.s32.totalorder %s20, 0
      %p40 = por %p38, %p39
      %p41 = scmp.ne.s32.totalorder %s30, %s33
      %p42 = scmp.eq.s32.totalorder %s25, 1
      %p43 = por %p41, %p42
      %p44 = scmp.ne.s32.totalorder %s33, %s34
      %p45 = scmp.eq.s32.totalorder %s25, 0
      %p46 = por %p44, %p45
      %p47 = scmp.ne.s32.totalorder %s33, %s34
      %p48 = scmp.eq.s32.totalorder %s26, 1
      %p49 = por %p47, %p48
      %p51 = scmp.ne.s32.totalorder %s34, %s50
      %p52 = scmp.eq.s32.totalorder %s26, 0
      %p53 = por %p51, %p52
      %s55 = sadd.s32 %s54, 1
      %p58 = scmp.eq.s32.totalorder %s20, 1
      %p59 = scmp.ne.s32.totalorder %s54, %s56
      %p60 = scmp.eq.s32.totalorder %s20, 0
      %p61 = por %p59, %p60
      %p62 = scmp.ne.s32.totalorder %s54, %s56
      %p63 = scmp.eq.s32.totalorder %s25, 1
      %p64 = por %p62, %p63
      %p65 = scmp.ne.s32.totalorder %s56, %s57
      %p66 = scmp.eq.s32.totalorder %s25, 0
      %p67 = por %p65, %p66
      %p68 = scmp.ne.s32.totalorder %s56, %s57
      %p69 = scmp.eq.s32.totalorder %s26, 1
      %p70 = por %p68, %p69
      %p72 = scmp.ne.s32.totalorder %s57, %s71
      %p73 = scmp.eq.s32.totalorder %s26, 0
      %p74 = por %p72, %p73
      %s76 = sadd.s32 %s75, 1
      %p79 = scmp.eq.s32.totalorder %s20, 1
      %p80 = scmp.ne.s32.totalorder %s75, %s77
      %p81 = scmp.eq.s32.totalorder %s20, 0
      %p82 = por %p80, %p81
      %p83 = scmp.ne.s32.totalorder %s75, %s77
      %p84 = scmp.eq.s32.totalorder %s25, 1
      %p85 = por %p83, %p84
      %p86 = scmp.ne.s32.totalorder %s77, %s78
      %p87 = scmp.eq.s32.totalorder %s25, 0
      %p88 = por %p86, %p87
      %p89 = scmp.ne.s32.totalorder %s77, %s78
      %p90 = scmp.eq.s32.totalorder %s26, 1
      %p91 = por %p89, %p90
      %p93 = scmp.ne.s32.totalorder %s78, %s92
      %p94 = scmp.eq.s32.totalorder %s26, 0
      %p95 = por %p93, %p94
      %s97 = sadd.s32 %s96, 1
      %p100 = scmp.eq.s32.totalorder %s20, 1
      %p101 = scmp.ne.s32.totalorder %s96, %s98
      %p102 = scmp.eq.s32.totalorder %s20, 0
      %p103 = por %p101, %p102
      %p104 = scmp.ne.s32.totalorder %s96, %s98
      %p105 = scmp.eq.s32.totalorder %s25, 1
      %p106 = por %p104, %p105
      %p107 = scmp.ne.s32.totalorder %s98, %s99
      %p108 = scmp.eq.s32.totalorder %s25, 0
      %p109 = por %p107, %p108
      %p110 = scmp.ne.s32.totalorder %s98, %s99
      %p111 = scmp.eq.s32.totalorder %s26, 1
      %p112 = por %p110, %p111
      %p114 = scmp.ne.s32.totalorder %s99, %s113
      %p115 = scmp.eq.s32.totalorder %s26, 0
      %p116 = por %p114, %p115
      %s118 = sadd.s32 %s117, 1
      %p121 = scmp.eq.s32.totalorder %s20, 1
      %p122 = scmp.ne.s32.totalorder %s117, %s119
      %p123 = scmp.eq.s32.totalorder %s20, 0
      %p124 = por %p122, %p123
      %p125 = scmp.ne.s32.totalorder %s117, %s119
      %p126 = scmp.eq.s32.totalorder %s25, 1
      %p127 = por %p125, %p126
      %p128 = scmp.ne.s32.totalorder %s119, %s120
      %p129 = scmp.eq.s32.totalorder %s25, 0
      %p130 = por %p128, %p129
      %p131 = scmp.ne.s32.totalorder %s119, %s120
      %p132 = scmp.eq.s32.totalorder %s26, 1
      %p133 = por %p131, %p132
      %p135 = scmp.ne.s32.totalorder %s120, %s134
      %p136 = scmp.eq.s32.totalorder %s26, 0
      %p137 = por %p135, %p136
      %s139 = sadd.s32 %s138, 1
      %p142 = scmp.eq.s32.totalorder %s20, 1
      %p143 = scmp.ne.s32.totalorder %s138, %s140
      %p144 = scmp.eq.s32.totalorder %s20, 0
      %p145 = por %p143, %p144
      %p146 = scmp.ne.s32.totalorder %s138, %s140
      %p147 = scmp.eq.s32.totalorder %s25, 1
      %p148 = por %p146, %p147
      %p149 = scmp.ne.s32.totalorder %s140, %s141
      %p150 = scmp.eq.s32.totalorder %s25, 0
      %p151 = por %p149, %p150
      %p152 = scmp.ne.s32.totalorder %s140, %s141
      %p153 = scmp.eq.s32.totalorder %s26, 1
      %p154 = por %p152, %p153
      %p156 = scmp.ne.s32.totalorder %s141, %s155
      %p157 = scmp.eq.s32.totalorder %s26, 0
      %p158 = por %p156, %p157
      %s160 = sadd.s32 %s159, 1
      %p163 = scmp.eq.s32.totalorder %s20, 1
      %p164 = scmp.ne.s32.totalorder %s159, %s161
      %p165 = scmp.eq.s32.totalorder %s20, 0
      %p166 = por %p164, %p165
      %p167 = scmp.ne.s32.totalorder %s159, %s161
      %p168 = scmp.eq.s32.totalorder %s25, 1
      %p169 = por %p167, %p168
      %p170 = scmp.ne.s32.totalorder %s161, %s162
      %p171 = scmp.eq.s32.totalorder %s25, 0
      %p172 = por %p170, %p171
      %p173 = scmp.ne.s32.totalorder %s161, %s162
      %p174 = scmp.eq.s32.totalorder %s26, 1
      %p175 = por %p173, %p174
      %p177 = scmp.ne.s32.totalorder %s162, %s176
      %p178 = scmp.eq.s32.totalorder %s26, 0
      %p179 = por %p177, %p178
      %s181 = sadd.s32 %s180, 1
      %p184 = scmp.eq.s32.totalorder %s20, 1
      %p185 = scmp.ne.s32.totalorder %s180, %s182
      %p186 = scmp.eq.s32.totalorder %s20, 0
      %p187 = por %p185, %p186
      %p188 = scmp.ne.s32.totalorder %s180, %s182
      %p189 = scmp.eq.s32.totalorder %s25, 1
      %p190 = por %p188, %p189
      %p191 = scmp.ne.s32.totalorder %s182, %s183
      %p192 = scmp.eq.s32.totalorder %s25, 0
      %p193 = por %p191, %p192
      %p194 = scmp.ne.s32.totalorder %s182, %s183
      %p195 = scmp.eq.s32.totalorder %s26, 1
      %p196 = por %p194, %p195
      %p198 = scmp.ne.s32.totalorder %s183, %s197
      %p199 = scmp.eq.s32.totalorder %s26, 0
      %p200 = por %p198, %p199
      %s202 = sadd.s32 %s201, 1
      %p205 = scmp.eq.s32.totalorder %s20, 1
      %p206 = scmp.ne.s32.totalorder %s201, %s203
      %p207 = scmp.eq.s32.totalorder %s20, 0
      %p208 = por %p206, %p207
      %p209 = scmp.ne.s32.totalorder %s201, %s203
      %p210 = scmp.eq.s32.totalorder %s25, 1
      %p211 = por %p209, %p210
      %p212 = scmp.ne.s32.totalorder %s203, %s204
      %p213 = scmp.eq.s32.totalorder %s25, 0
      %p214 = por %p212, %p213
      %p215 = scmp.ne.s32.totalorder %s203, %s204
      %p216 = scmp.eq.s32.totalorder %s26, 1
      %p217 = por %p215, %p216
      %p219 = scmp.ne.s32.totalorder %s204, %s218
      %p220 = scmp.eq.s32.totalorder %s26, 0
      %p221 = por %p219, %p220
      %s223 = sadd.s32 %s222, 1
      %p226 = scmp.eq.s32.totalorder %s20, 1
      %p227 = scmp.ne.s32.totalorder %s222, %s224
      %p228 = scmp.eq.s32.totalorder %s20, 0
      %p229 = por %p227, %p228
      %p230 = scmp.ne.s32.totalorder %s222, %s224
      %p231 = scmp.eq.s32.totalorder %s25, 1
      %p232 = por %p230, %p231
      %p233 = scmp.ne.s32.totalorder %s224, %s225
      %p234 = scmp.eq.s32.totalorder %s25, 0
      %p235 = por %p233, %p234
      %p236 = scmp.ne.s32.totalorder %s224, %s225
      %p237 = scmp.eq.s32.totalorder %s26, 1
      %p238 = por %p236, %p237
      %p240 = scmp.ne.s32.totalorder %s225, %s239
      %p241 = scmp.eq.s32.totalorder %s26, 0
      %p242 = por %p240, %p241
      %s244 = sadd.s32 %s243, 1
      %p247 = scmp.eq.s32.totalorder %s20, 1
      %p248 = scmp.ne.s32.totalorder %s243, %s245
      %p249 = scmp.eq.s32.totalorder %s20, 0
      %p250 = por %p248, %p249
      %p251 = scmp.ne.s32.totalorder %s243, %s245
      %p252 = scmp.eq.s32.totalorder %s25, 1
      %p253 = por %p251, %p252
      %p254 = scmp.ne.s32.totalorder %s245, %s246
      %p255 = scmp.eq.s32.totalorder %s25, 0
      %p256 = por %p254, %p255
      %p257 = scmp.ne.s32.totalorder %s245, %s246
      %p258 = scmp.eq.s32.totalorder %s26, 1
      %p259 = por %p257, %p258
      %p261 = scmp.ne.s32.totalorder %s246, %s260
      %p262 = scmp.eq.s32.totalorder %s26, 0
      %p263 = por %p261, %p262
      %s264 = ssub.s32 %s20, %s27
      %p265 = scmp.eq.s32.totalorder %s264, 0
      %s267 = sadd.s32 %s266, 1
      %s268 = scalar_select %p265, %s266, %s267
      %p271 = pneg %p265
      %p272 = scmp.eq.s32.totalorder %s20, 1
      %p273 = por %p271, %p272
      %p274 = scmp.ne.s32.totalorder %s266, %s269
      %p275 = scmp.eq.s32.totalorder %s20, 0
      %p276 = por %p274, %p275
      %p277 = scmp.ne.s32.totalorder %s266, %s269
      %p278 = scmp.eq.s32.totalorder %s25, 1
      %p279 = por %p277, %p278
      %p280 = scmp.ne.s32.totalorder %s269, %s270
      %p281 = scmp.eq.s32.totalorder %s25, 0
      %p282 = por %p280, %p281
      %p283 = scmp.ne.s32.totalorder %s269, %s270
      %p284 = scmp.eq.s32.totalorder %s26, 1
      %p285 = por %p283, %p284
      %p287 = scmp.ne.s32.totalorder %s270, %s286
      %p288 = scmp.eq.s32.totalorder %s26, 0
      %p289 = por %p287, %p288
      %p290 = scmp.le.s32.totalorder 1, %s20
      %p291 = scmp.lt.s32.totalorder %s20, 3
      %p292 = pnand %p290, %p291
      %p293 = pneg %p292
      // Predicated region
      $region9: #{tpu_custom_call.1} parent=5 // pred_check
        _
      $region10: #{tpu_custom_call.1} parent=5 // pred_check_branch
        %295 = sbr.rel (%p292) target = $region12
      $region11: #{tpu_custom_call.1} parent=5 // pred_region
        %s296 = ssub.s32 %s20, 1
        // Predicated region
        $region13: #{tpu_custom_call.1} parent=11 // pred_check
          %p297 = pneg %p67
        $region14: #{tpu_custom_call.1} parent=11 // pred_check_branch
          %299 = sbr.rel (%p297) target = $region16
        $region15: #{tpu_custom_call.1} parent=11 // pred_region
          _
        $region16: #{tpu_custom_call.1} parent=11 // pred_fallthru
          _
        // Predicated region
        $region17: #{tpu_custom_call.1} parent=11 // pred_check
          %p300 = pneg %p88
        $region18: #{tpu_custom_call.1} parent=11 // pred_check_branch
          %302 = sbr.rel (%p300) target = $region20
        $region19: #{tpu_custom_call.1} parent=11 // pred_region
          _
        $region20: #{tpu_custom_call.1} parent=11 // pred_fallthru
          _
        // Predicated region
        $region21: #{tpu_custom_call.1} parent=11 // pred_check
          %p303 = pneg %p109
        $region22: #{tpu_custom_call.1} parent=11 // pred_check_branch
          %305 = sbr.rel (%p303) target = $region24
        $region23: #{tpu_custom_call.1} parent=11 // pred_region
          _
        $region24: #{tpu_custom_call.1} parent=11 // pred_fallthru
          _
        // Predicated region
        $region25: #{tpu_custom_call.1} parent=11 // pred_check
          %p306 = pneg %p130
        $region26: #{tpu_custom_call.1} parent=11 // pred_check_branch
          %308 = sbr.rel (%p306) target = $region28
        $region27: #{tpu_custom_call.1} parent=11 // pred_region
          _
        $region28: #{tpu_custom_call.1} parent=11 // pred_fallthru
          _
        // Predicated region
        $region29: #{tpu_custom_call.1} parent=11 // pred_check
          %p309 = pneg %p151
        $region30: #{tpu_custom_call.1} parent=11 // pred_check_branch
          %311 = sbr.rel (%p309) target = $region32
        $region31: #{tpu_custom_call.1} parent=11 // pred_region
          _
        $region32: #{tpu_custom_call.1} parent=11 // pred_fallthru
          _
        // Predicated region
        $region33: #{tpu_custom_call.1} parent=11 // pred_check
          %p312 = pneg %p172
        $region34: #{tpu_custom_call.1} parent=11 // pred_check_branch
          %314 = sbr.rel (%p312) target = $region36
        $region35: #{tpu_custom_call.1} parent=11 // pred_region
          _
        $region36: #{tpu_custom_call.1} parent=11 // pred_fallthru
          _
        // Predicated region
        $region37: #{tpu_custom_call.1} parent=11 // pred_check
          %p315 = pneg %p193
        $region38: #{tpu_custom_call.1} parent=11 // pred_check_branch
          %317 = sbr.rel (%p315) target = $region40
        $region39: #{tpu_custom_call.1} parent=11 // pred_region
          _
        $region40: #{tpu_custom_call.1} parent=11 // pred_fallthru
          _
        // Predicated region
        $region41: #{tpu_custom_call.1} parent=11 // pred_check
          %p318 = pneg %p214
        $region42: #{tpu_custom_call.1} parent=11 // pred_check_branch
          %320 = sbr.rel (%p318) target = $region44
        $region43: #{tpu_custom_call.1} parent=11 // pred_region
          _
        $region44: #{tpu_custom_call.1} parent=11 // pred_fallthru
          _
        // Predicated region
        $region45: #{tpu_custom_call.1} parent=11 // pred_check
          %p321 = pneg %p235
        $region46: #{tpu_custom_call.1} parent=11 // pred_check_branch
          %323 = sbr.rel (%p321) target = $region48
        $region47: #{tpu_custom_call.1} parent=11 // pred_region
          _
        $region48: #{tpu_custom_call.1} parent=11 // pred_fallthru
          _
        // Predicated region
        $region49: #{tpu_custom_call.1} parent=11 // pred_check
          %p324 = pneg %p256
        $region50: #{tpu_custom_call.1} parent=11 // pred_check_branch
          %326 = sbr.rel (%p324) target = $region52
        $region51: #{tpu_custom_call.1} parent=11 // pred_region
          _
        $region52: #{tpu_custom_call.1} parent=11 // pred_fallthru
          _
      $region12: #{tpu_custom_call.1} parent=5 // pred_fallthru
        _
      %p327 = scmp.lt.s32.totalorder %s20, 2
      // Predicated region
      $region53: #{tpu_custom_call.1} parent=5 // pred_check
        %p328 = pneg %p327
      $region54: #{tpu_custom_call.1} parent=5 // pred_check_branch
        %330 = sbr.rel (%p328) target = $region56
      $region55: #{tpu_custom_call.1} parent=5 // pred_region
        // Predicated region
        $region57: #{tpu_custom_call.1} parent=55 // pred_check
          %p331 = pneg %p40
        $region58: #{tpu_custom_call.1} parent=55 // pred_check_branch
          %333 = sbr.rel (%p331) target = $region60
        $region59: #{tpu_custom_call.1} parent=55 // pred_region
          %p334 = scmp.lt.s32.totalorder %s20, 1
          %s335 = scalar_select %p334, %s20, 1
          %s336 = smul.addr %s335, 8
          %s337 = smul.addr %s336, 8
          %s338 = scalar_lea.vmem %s0, %s337
        $region60: #{tpu_custom_call.1} parent=55 // pred_fallthru
          _
      $region56: #{tpu_custom_call.1} parent=5 // pred_fallthru
        _
      %p339 = scmp.le.s32.totalorder 1, %s20
      %p340 = scmp.lt.s32.totalorder %s20, 3
      %p341 = pnand %p339, %p340
      %p342 = pneg %p341
      // Predicated region
      $region61: #{tpu_custom_call.1} parent=5 // pred_check
        _
      $region62: #{tpu_custom_call.1} parent=5 // pred_check_branch
        %344 = sbr.rel (%p341) target = $region64
      $region63: #{tpu_custom_call.1} parent=5 // pred_region
        %s345 = ssub.s32 %s20, 1
        %p346 = scmp.lt.s32.totalorder %s25, 1
        %s347 = scalar_select %p346, %s25, 1
        %s348 = smul.addr %s347, 8
        %s349 = smul.addr %s348, 8
        %s350 = scalar_lea.vmem %s0, %s349
        %p351 = pneg %p46
        %p352 = pneg %p43
        %p353 = pneg %p67
        %p354 = pneg %p64
        %p355 = pneg %p88
        %p356 = pneg %p85
        %p357 = pneg %p109
        %p358 = pneg %p106
        %p359 = pneg %p130
        %p360 = pneg %p127
        %p361 = pneg %p151
        %p362 = pneg %p148
        %p363 = pneg %p172
        %p364 = pneg %p169
        %p365 = pneg %p193
        %p366 = pneg %p190
        %p367 = pneg %p214
        %p368 = pneg %p211
        %p369 = pneg %p235
        %p370 = pneg %p232
        %p371 = pneg %p256
        %p372 = pneg %p253
        %p373 = pneg %p282
        %p374 = pneg %p279
        %s375 = sand.u32 %s269, 1
        %s376 = scalar_lea.sflag [#allocation3], %s375
        %s377 = sand.u32 %s269, 1
        %s378 = smul.addr %s377, 64
        %s379 = scalar_lea.vmem [#allocation2], %s378
        %p380 = scmp.lt.s32.totalorder %s25, 1
        %s381 = scalar_select %p380, %s25, 1
        %s382 = smul.addr %s381, 8
        %s383 = smul.addr %s382, 8
        %s384 = scalar_lea.vmem %s0, %s383
        %v386 = vld [vmem:[%s384] sm:$0xff]
        %v387 = vld [vmem:[%s384 + $0x8] sm:$0xff]
        %v388 = vld [vmem:[%s384 + $0x10] sm:$0xff]
        %v389 = vld [vmem:[%s384 + $0x18] sm:$0xff]
        %v390 = vld [vmem:[%s384 + $0x20] sm:$0xff]
        %v391 = vld [vmem:[%s384 + $0x28] sm:$0xff]
        %v392 = vld [vmem:[%s384 + $0x30] sm:$0xff]
        %v393 = vld [vmem:[%s384 + $0x38] sm:$0xff]
        %v394 = vld [vmem:[%s1] sm:$0xf]
        %v395 = vld [vmem:[%s1 + $0x4] sm:$0xf]
        %v396 = vld [vmem:[%s1 + $0x8] sm:$0xf]
        %v397 = vld [vmem:[%s1 + $0xc] sm:$0xf]
        %v398 = vpack.c.bf16 %v388, %v386
        %v399 = vpack.c.bf16 %v389, %v387
        %v400 = vpack.c.bf16 %v392, %v390
        %v401 = vpack.c.bf16 %v393, %v391
        %v402 = vld [vmem:[%s2] sm:$0xff]
        %v403 = vld [vmem:[%s2 + $0x8] sm:$0xff]
        %v404 = vld [vmem:[%s2 + $0x10] sm:$0xff]
        %v405 = vld [vmem:[%s2 + $0x18] sm:$0xff]
        %407 = vset.pattern.permute.xlu0 0
        %408 = vperm.xlu0 %407, %v402
        %v409 = vpop.permute.xlu0 %408
        %412 = vset.pattern.permute.xlu0 0
        %413 = vperm.xlu0 %412, %v403
        %v414 = vpop.permute.xlu0 %413
        %417 = vset.pattern.permute.xlu0 0
        %418 = vperm.xlu0 %417, %v404
        %v419 = vpop.permute.xlu0 %418
        %422 = vset.pattern.permute.xlu0 0
        %423 = vperm.xlu0 %422, %v405
        %v424 = vpop.permute.xlu0 %423
        %v430 = vunpack.c.l.b16 %v394
        %v431 = vunpack.c.l.b16 %v395
        %v432 = vunpack.c.l.b16 %v396
        %v433 = vunpack.c.l.b16 %v397
        %v434 = vpack.c.b16 %v431, %v430
        %v435 = vpack.c.b16 %v433, %v432
        %vm436 = vcmask 261120
        %v438 = vsel %vm436, %v434, 0
        %v441 = vsel %vm436, %v435, 0
        %443 = vmatpush.bf16.msra.mxu0 0
        %444 = vmatpush.bf16.msra.mxu0 0
        %445 = vmatpush.bf16.msra.mxu0 0
        %446 = vmatpush.bf16.msra.mxu0 0
        %447 = vmatpush.bf16.msra.mxu0 0
        %448 = vmatpush.bf16.msra.mxu0 0
        %449 = vmatpush.bf16.msra.mxu0 %v400
        %450 = vmatpush.bf16.msra.mxu0 %v398
        %451 = vmatmul.bf16.gmra.mxu0 %v438
        %v452 = vpop.f32.mrf.mxu0
        %v453 = vadd.f32 %v409, %v452
        %v454 = vpop.f32.mrf.mxu0
        %v455 = vadd.f32 %v414, %v454
        %456 = vmatmul.bf16.gmra.mxu0 %v441
        %v457 = vpop.f32.mrf.mxu0
        %v458 = vadd.f32 %v419, %v457
        %v459 = vpop.f32.mrf.mxu0
        %v460 = vadd.f32 %v424, %v459
        %461 = vdwg.mxu0
        %462 = vmatpush.bf16.msra.mxu0 0
        %463 = vmatpush.bf16.msra.mxu0 0
        %464 = vmatpush.bf16.msra.mxu0 0
        %465 = vmatpush.bf16.msra.mxu0 0
        %466 = vmatpush.bf16.msra.mxu0 0
        %467 = vmatpush.bf16.msra.mxu0 0
        %468 = vmatpush.bf16.msra.mxu0 %v401
        %469 = vmatpush.bf16.msra.mxu0 %v399
        %470 = vmatmul.bf16.gmra.mxu0 %v438
        %v471 = vpop.f32.mrf.mxu0
        %v472 = vadd.f32 %v409, %v471
        %v473 = vpop.f32.mrf.mxu0
        %v474 = vadd.f32 %v414, %v473
        %475 = vmatmul.bf16.gmra.mxu0 %v441
        %v476 = vpop.f32.mrf.mxu0
        %v477 = vadd.f32 %v419, %v476
        %v478 = vpop.f32.mrf.mxu0
        %v479 = vadd.f32 %v424, %v478
        %480 = vdwg.mxu0
        %v481 = vmax.f32 %v453, 0.0
        %v482 = vmax.f32 %v472, 0.0
        %v483 = vmax.f32 %v455, 0.0
        %v484 = vmax.f32 %v474, 0.0
        %v485 = vmax.f32 %v458, 0.0
        %v486 = vmax.f32 %v477, 0.0
        %v487 = vmax.f32 %v460, 0.0
        %v488 = vmax.f32 %v479, 0.0
        %v489 = vld [vmem:[%s3] sm:$0xf]
        %v490 = vld [vmem:[%s3 + $0x4] sm:$0xf]
        %v491 = vld [vmem:[%s3 + $0x8] sm:$0xf]
        %v492 = vld [vmem:[%s3 + $0xc] sm:$0xf]
        %v493 = vpack.c.bf16 %v483, %v481
        %v494 = vpack.c.bf16 %v484, %v482
        %v495 = vpack.c.bf16 %v487, %v485
        %v496 = vpack.c.bf16 %v488, %v486
        %v497 = vld [vmem:[%s4] sm:$0xff]
        %v498 = vld [vmem:[%s4 + $0x8] sm:$0xff]
        %v499 = vld [vmem:[%s4 + $0x10] sm:$0xff]
        %v500 = vld [vmem:[%s4 + $0x18] sm:$0xff]
        %502 = vset.pattern.permute.xlu0 0
        %503 = vperm.xlu0 %502, %v497
        %v504 = vpop.permute.xlu0 %503
        %507 = vset.pattern.permute.xlu0 0
        %508 = vperm.xlu0 %507, %v498
        %v509 = vpop.permute.xlu0 %508
        %512 = vset.pattern.permute.xlu0 0
        %513 = vperm.xlu0 %512, %v499
        %v514 = vpop.permute.xlu0 %513
        %517 = vset.pattern.permute.xlu0 0
        %518 = vperm.xlu0 %517, %v500
        %v519 = vpop.permute.xlu0 %518
        %v525 = vunpack.c.l.b16 %v489
        %v526 = vunpack.c.l.b16 %v490
        %v527 = vunpack.c.l.b16 %v491
        %v528 = vunpack.c.l.b16 %v492
        %v529 = vpack.c.b16 %v526, %v525
        %v530 = vpack.c.b16 %v528, %v527
        %v532 = vsel %vm436, %v529, 0
        %v535 = vsel %vm436, %v530, 0
        %537 = vmatpush.bf16.msra.mxu0 0
        %538 = vmatpush.bf16.msra.mxu0 0
        %539 = vmatpush.bf16.msra.mxu0 0
        %540 = vmatpush.bf16.msra.mxu0 0
        %541 = vmatpush.bf16.msra.mxu0 0
        %542 = vmatpush.bf16.msra.mxu0 0
        %543 = vmatpush.bf16.msra.mxu0 %v495
        %544 = vmatpush.bf16.msra.mxu0 %v493
        %545 = vmatmul.bf16.gmra.mxu0 %v532
        %v546 = vpop.f32.mrf.mxu0
        %v547 = vadd.f32 %v504, %v546
        %v548 = vpop.f32.mrf.mxu0
        %v549 = vadd.f32 %v509, %v548
        %550 = vmatmul.bf16.gmra.mxu0 %v535
        %v551 = vpop.f32.mrf.mxu0
        %v552 = vadd.f32 %v514, %v551
        %v553 = vpop.f32.mrf.mxu0
        %v554 = vadd.f32 %v519, %v553
        %555 = vdwg.mxu0
        %556 = vmatpush.bf16.msra.mxu0 0
        %557 = vmatpush.bf16.msra.mxu0 0
        %558 = vmatpush.bf16.msra.mxu0 0
        %559 = vmatpush.bf16.msra.mxu0 0
        %560 = vmatpush.bf16.msra.mxu0 0
        %561 = vmatpush.bf16.msra.mxu0 0
        %562 = vmatpush.bf16.msra.mxu0 %v496
        %563 = vmatpush.bf16.msra.mxu0 %v494
        %564 = vmatmul.bf16.gmra.mxu0 %v532
        %v565 = vpop.f32.mrf.mxu0
        %v566 = vadd.f32 %v504, %v565
        %v567 = vpop.f32.mrf.mxu0
        %v568 = vadd.f32 %v509, %v567
        %569 = vmatmul.bf16.gmra.mxu0 %v535
        %v570 = vpop.f32.mrf.mxu0
        %v571 = vadd.f32 %v514, %v570
        %v572 = vpop.f32.mrf.mxu0
        %v573 = vadd.f32 %v519, %v572
        %574 = vdwg.mxu0
        %v575 = vadd.f32 %v547, %v566
        %576 = vadd.xlane.f32.xlu0 %v575
        %v577 = vpop.xlane.xlu0 %576
        %v578 = vadd.f32 %v549, %v568
        %579 = vadd.xlane.f32.xlu0 %v578
        %v580 = vpop.xlane.xlu0 %579
        %v581 = vadd.f32 %v552, %v571
        %582 = vadd.xlane.f32.xlu0 %v581
        %v583 = vpop.xlane.xlu0 %582
        %v584 = vadd.f32 %v554, %v573
        %585 = vadd.xlane.f32.xlu0 %v584
        %v586 = vpop.xlane.xlu0 %585
        %v587 = vmul.f32 %v577, 0.00390625
        %v588 = vmul.f32 %v580, 0.00390625
        %v589 = vmul.f32 %v583, 0.00390625
        %v590 = vmul.f32 %v586, 0.00390625
        %v591 = vld [vmem:[%s5] sm:$0x3]
        %v592 = vld [vmem:[%s6] sm:$0x3]
        %v594 = vsel %vm436, %v591, 0
        %596 = vmatpush.msra.mxu0 0.0
        %597 = vmatpush.msra.mxu0 0.0
        %598 = vmatpush.msra.mxu0 0.0
        %599 = vmatpush.msra.mxu0 0.0
        %600 = vmatpush.msra.mxu0 0.0
        %601 = vmatpush.msra.mxu0 0.0
        %602 = vmatpush.msra.mxu0 0.0
        %603 = vmatpush.msra.mxu0 0.0
        %604 = vmatpush.msra.mxu0 0.0
        %605 = vmatpush.msra.mxu0 0.0
        %606 = vmatpush.msra.mxu0 0.0
        %607 = vmatpush.msra.mxu0 0.0
        %608 = vmatpush.msra.mxu0 %v590
        %609 = vmatpush.msra.mxu0 %v589
        %610 = vmatpush.msra.mxu0 %v588
        %611 = vmatpush.msra.mxu0 %v587
        %612 = vmatmul.f32.gmra.mxu0 %v594
        %v613 = vpop.f32.mrf.mxu0
        %v614 = vadd.f32 %v592, %v613
        %615 = vdwg.mxu0
        %v616 = vmax.f32 %v614, 0.0
        %v617 = vld [vmem:[%s7] sm:$0xff]
        %v618 = vld [vmem:[%s7 + $0x8] sm:$0xff]
        %v619 = vld [vmem:[%s7 + $0x10] sm:$0xff]
        %v620 = vld [vmem:[%s7 + $0x18] sm:$0xff]
        %v621 = vld [vmem:[%s8] sm:$0xff]
        %v622 = vld [vmem:[%s8 + $0x8] sm:$0xff]
        %v623 = vld [vmem:[%s8 + $0x10] sm:$0xff]
        %v624 = vld [vmem:[%s8 + $0x18] sm:$0xff]
        %vm625 = vcmask 15360
        %v627 = vsel %vm625, %v617, 0
        %v630 = vsel %vm625, %v618, 0
        %v633 = vsel %vm625, %v619, 0
        %v636 = vsel %vm625, %v620, 0
        %vm638 = vcmask 1041408
        %v640 = vsel %vm638, %v616, 0
        %642 = vmatpush.msra.mxu0 0.0
        %643 = vmatpush.msra.mxu0 0.0
        %644 = vmatpush.msra.mxu0 0.0
        %645 = vmatpush.msra.mxu0 0.0
        %646 = vmatpush.msra.mxu0 0.0
        %647 = vmatpush.msra.mxu0 0.0
        %648 = vmatpush.msra.mxu0 0.0
        %649 = vmatpush.msra.mxu0 0.0
        %650 = vmatpush.msra.mxu0 0.0
        %651 = vmatpush.msra.mxu0 0.0
        %652 = vmatpush.msra.mxu0 0.0
        %653 = vmatpush.msra.mxu0 0.0
        %654 = vmatpush.msra.mxu0 0.0
        %655 = vmatpush.msra.mxu0 0.0
        %656 = vmatpush.msra.mxu0 0.0
        %657 = vmatpush.msra.mxu0 %v640
        %658 = vmatmul.f32.gmra.mxu0 %v627
        %v659 = vpop.f32.mrf.mxu0
        %v660 = vadd.f32 %v621, %v659
        %661 = vmatmul.f32.gmra.mxu0 %v630
        %v662 = vpop.f32.mrf.mxu0
        %v663 = vadd.f32 %v622, %v662
        %664 = vmatmul.f32.gmra.mxu0 %v633
        %v665 = vpop.f32.mrf.mxu0
        %v666 = vadd.f32 %v623, %v665
        %667 = vmatmul.f32.gmra.mxu0 %v636
        %v668 = vpop.f32.mrf.mxu0
        %v669 = vadd.f32 %v624, %v668
        %670 = vdwg.mxu0
        %v671 = vxor.u32 %v660, 2147483648
        %v672 = vxor.u32 %v663, 2147483648
        %v673 = vxor.u32 %v666, 2147483648
        %v674 = vxor.u32 %v669, 2147483648
        %v675 = vmul.f32 %v671, 1.442695
        %v676 = vpow.pop %v675
        %v677 = vmul.f32 %v672, 1.442695
        %v678 = vpow.pop %v677
        %v679 = vmul.f32 %v673, 1.442695
        %v680 = vpow.pop %v679
        %v681 = vmul.f32 %v674, 1.442695
        %v682 = vpow.pop %v681
        %v683 = vadd.f32 %v676, 1.0
        %v684 = vadd.f32 %v678, 1.0
        %v685 = vadd.f32 %v680, 1.0
        %v686 = vadd.f32 %v682, 1.0
        %v687 = vrcp.pop %v683
        %v688 = vmul.f32 %v683, %v687
        %v689 = vsub.f32 1.0, %v688
        %v690 = vmul.f32 %v687, %v689
        %v691 = vadd.f32 %v687, %v690
        %vm692 = vweird.f32 %v683
        %vm693 = vweird.f32 %v687
        %vm694 = vmor %vm692, %vm693
        %v695 = vsel %vm694, %v687, %v691
        %v696 = vand.u32 2147483647, %v683
        %vm697 = vcmp.eq.f32.partialorder %v696, 8.507059e+37
        %v698 = vand.u32 %v683, 2147483648
        %v699 = vor.u32 1.1754944e-38, %v698
        %v700 = vsel %vm697, %v699, %v695
        %v701 = vmul.f32 1.0, %v700
        %v702 = vrcp.pop %v684
        %v703 = vmul.f32 %v684, %v702
        %v704 = vsub.f32 1.0, %v703
        %v705 = vmul.f32 %v702, %v704
        %v706 = vadd.f32 %v702, %v705
        %vm707 = vweird.f32 %v684
        %vm708 = vweird.f32 %v702
        %vm709 = vmor %vm707, %vm708
        %v710 = vsel %vm709, %v702, %v706
        %v711 = vand.u32 2147483647, %v684
        %vm712 = vcmp.eq.f32.partialorder %v711, 8.507059e+37
        %v713 = vand.u32 %v684, 2147483648
        %v714 = vor.u32 1.1754944e-38, %v713
        %v715 = vsel %vm712, %v714, %v710
        %v716 = vmul.f32 1.0, %v715
        %v717 = vrcp.pop %v685
        %v718 = vmul.f32 %v685, %v717
        %v719 = vsub.f32 1.0, %v718
        %v720 = vmul.f32 %v717, %v719
        %v721 = vadd.f32 %v717, %v720
        %vm722 = vweird.f32 %v685
        %vm723 = vweird.f32 %v717
        %vm724 = vmor %vm722, %vm723
        %v725 = vsel %vm724, %v717, %v721
        %v726 = vand.u32 2147483647, %v685
        %vm727 = vcmp.eq.f32.partialorder %v726, 8.507059e+37
        %v728 = vand.u32 %v685, 2147483648
        %v729 = vor.u32 1.1754944e-38, %v728
        %v730 = vsel %vm727, %v729, %v725
        %v731 = vmul.f32 1.0, %v730
        %v732 = vrcp.pop %v686
        %v733 = vmul.f32 %v686, %v732
        %v734 = vsub.f32 1.0, %v733
        %v735 = vmul.f32 %v732, %v734
        %v736 = vadd.f32 %v732, %v735
        %vm737 = vweird.f32 %v686
        %vm738 = vweird.f32 %v732
        %vm739 = vmor %vm737, %vm738
        %v740 = vsel %vm739, %v732, %v736
        %v741 = vand.u32 2147483647, %v686
        %vm742 = vcmp.eq.f32.partialorder %v741, 8.507059e+37
        %v743 = vand.u32 %v686, 2147483648
        %v744 = vor.u32 1.1754944e-38, %v743
        %v745 = vsel %vm742, %v744, %v740
        %v746 = vmul.f32 1.0, %v745
        %748 = vset.pattern.permute.xlu0 0
        %749 = vperm.xlu0 %748, %v701
        %v750 = vpop.permute.xlu0 %749
        %753 = vset.pattern.permute.xlu0 0
        %754 = vperm.xlu0 %753, %v716
        %v755 = vpop.permute.xlu0 %754
        %758 = vset.pattern.permute.xlu0 0
        %759 = vperm.xlu0 %758, %v731
        %v760 = vpop.permute.xlu0 %759
        %763 = vset.pattern.permute.xlu0 0
        %764 = vperm.xlu0 %763, %v746
        %v765 = vpop.permute.xlu0 %764
        %v767 = vmul.f32 %v547, %v750
        %v768 = vmul.f32 %v566, %v750
        %v769 = vmul.f32 %v549, %v755
        %v770 = vmul.f32 %v568, %v755
        %v771 = vmul.f32 %v552, %v760
        %v772 = vmul.f32 %v571, %v760
        %v773 = vmul.f32 %v554, %v765
        %v774 = vmul.f32 %v573, %v765
        %v775 = vadd.f32 %v767, %v386
        %v776 = vadd.f32 %v768, %v387
        %v777 = vadd.f32 %v769, %v388
        %v778 = vadd.f32 %v770, %v389
        %v779 = vadd.f32 %v771, %v390
        %v780 = vadd.f32 %v772, %v391
        %v781 = vadd.f32 %v773, %v392
        %v782 = vadd.f32 %v774, %v393
        %s783 = scalar_lea.vmem %s1, 16
        %v784 = vld [vmem:[%s783] sm:$0xf]
        %v785 = vld [vmem:[%s783 + $0x4] sm:$0xf]
        %v786 = vld [vmem:[%s783 + $0x8] sm:$0xf]
        %v787 = vld [vmem:[%s783 + $0xc] sm:$0xf]
        %v788 = vpack.c.bf16 %v777, %v775
        %v789 = vpack.c.bf16 %v778, %v776
        %v790 = vpack.c.bf16 %v781, %v779
        %v791 = vpack.c.bf16 %v782, %v780
        %s792 = scalar_lea.vmem %s2, 32
        %v793 = vld [vmem:[%s792] sm:$0xff]
        %v794 = vld [vmem:[%s792 + $0x8] sm:$0xff]
        %v795 = vld [vmem:[%s792 + $0x10] sm:$0xff]
        %v796 = vld [vmem:[%s792 + $0x18] sm:$0xff]
        %798 = vset.pattern.permute.xlu0 0
        %799 = vperm.xlu0 %798, %v793
        %v800 = vpop.permute.xlu0 %799
        %803 = vset.pattern.permute.xlu0 0
        %804 = vperm.xlu0 %803, %v794
        %v805 = vpop.permute.xlu0 %804
        %808 = vset.pattern.permute.xlu0 0
        %809 = vperm.xlu0 %808, %v795
        %v810 = vpop.permute.xlu0 %809
        %813 = vset.pattern.permute.xlu0 0
        %814 = vperm.xlu0 %813, %v796
        %v815 = vpop.permute.xlu0 %814
        %v821 = vunpack.c.l.b16 %v784
        %v822 = vunpack.c.l.b16 %v785
        %v823 = vunpack.c.l.b16 %v786
        %v824 = vunpack.c.l.b16 %v787
        %v825 = vpack.c.b16 %v822, %v821
        %v826 = vpack.c.b16 %v824, %v823
        %v828 = vsel %vm436, %v825, 0
        %v831 = vsel %vm436, %v826, 0
        %833 = vmatpush.bf16.msra.mxu0 0
        %834 = vmatpush.bf16.msra.mxu0 0
        %835 = vmatpush.bf16.msra.mxu0 0
        %836 = vmatpush.bf16.msra.mxu0 0
        %837 = vmatpush.bf16.msra.mxu0 0
        %838 = vmatpush.bf16.msra.mxu0 0
        %839 = vmatpush.bf16.msra.mxu0 %v790
        %840 = vmatpush.bf16.msra.mxu0 %v788
        %841 = vmatmul.bf16.gmra.mxu0 %v828
        %v842 = vpop.f32.mrf.mxu0
        %v843 = vadd.f32 %v800, %v842
        %v844 = vpop.f32.mrf.mxu0
        %v845 = vadd.f32 %v805, %v844
        %846 = vmatmul.bf16.gmra.mxu0 %v831
        %v847 = vpop.f32.mrf.mxu0
        %v848 = vadd.f32 %v810, %v847
        %v849 = vpop.f32.mrf.mxu0
        %v850 = vadd.f32 %v815, %v849
        %851 = vdwg.mxu0
        %852 = vmatpush.bf16.msra.mxu0 0
        %853 = vmatpush.bf16.msra.mxu0 0
        %854 = vmatpush.bf16.msra.mxu0 0
        %855 = vmatpush.bf16.msra.mxu0 0
        %856 = vmatpush.bf16.msra.mxu0 0
        %857 = vmatpush.bf16.msra.mxu0 0
        %858 = vmatpush.bf16.msra.mxu0 %v791
        %859 = vmatpush.bf16.msra.mxu0 %v789
        %860 = vmatmul.bf16.gmra.mxu0 %v828
        %v861 = vpop.f32.mrf.mxu0
        %v862 = vadd.f32 %v800, %v861
        %v863 = vpop.f32.mrf.mxu0
        %v864 = vadd.f32 %v805, %v863
        %865 = vmatmul.bf16.gmra.mxu0 %v831
        %v866 = vpop.f32.mrf.mxu0
        %v867 = vadd.f32 %v810, %v866
        %v868 = vpop.f32.mrf.mxu0
        %v869 = vadd.f32 %v815, %v868
        %870 = vdwg.mxu0
        %v871 = vmax.f32 %v843, 0.0
        %v872 = vmax.f32 %v862, 0.0
        %v873 = vmax.f32 %v845, 0.0
        %v874 = vmax.f32 %v864, 0.0
        %v875 = vmax.f32 %v848, 0.0
        %v876 = vmax.f32 %v867, 0.0
        %v877 = vmax.f32 %v850, 0.0
        %v878 = vmax.f32 %v869, 0.0
        %s879 = scalar_lea.vmem %s3, 16
        %v880 = vld [vmem:[%s879] sm:$0xf]
        %v881 = vld [vmem:[%s879 + $0x4] sm:$0xf]
        %v882 = vld [vmem:[%s879 + $0x8] sm:$0xf]
        %v883 = vld [vmem:[%s879 + $0xc] sm:$0xf]
        %v884 = vpack.c.bf16 %v873, %v871
        %v885 = vpack.c.bf16 %v874, %v872
        %v886 = vpack.c.bf16 %v877, %v875
        %v887 = vpack.c.bf16 %v878, %v876
        %s888 = scalar_lea.vmem %s4, 32
        %v889 = vld [vmem:[%s888] sm:$0xff]
        %v890 = vld [vmem:[%s888 + $0x8] sm:$0xff]
        %v891 = vld [vmem:[%s888 + $0x10] sm:$0xff]
        %v892 = vld [vmem:[%s888 + $0x18] sm:$0xff]
        %894 = vset.pattern.permute.xlu0 0
        %895 = vperm.xlu0 %894, %v889
        %v896 = vpop.permute.xlu0 %895
        %899 = vset.pattern.permute.xlu0 0
        %900 = vperm.xlu0 %899, %v890
        %v901 = vpop.permute.xlu0 %900
        %904 = vset.pattern.permute.xlu0 0
        %905 = vperm.xlu0 %904, %v891
        %v906 = vpop.permute.xlu0 %905
        %909 = vset.pattern.permute.xlu0 0
        %910 = vperm.xlu0 %909, %v892
        %v911 = vpop.permute.xlu0 %910
        %v917 = vunpack.c.l.b16 %v880
        %v918 = vunpack.c.l.b16 %v881
        %v919 = vunpack.c.l.b16 %v882
        %v920 = vunpack.c.l.b16 %v883
        %v921 = vpack.c.b16 %v918, %v917
        %v922 = vpack.c.b16 %v920, %v919
        %v924 = vsel %vm436, %v921, 0
        %v927 = vsel %vm436, %v922, 0
        %929 = vmatpush.bf16.msra.mxu0 0
        %930 = vmatpush.bf16.msra.mxu0 0
        %931 = vmatpush.bf16.msra.mxu0 0
        %932 = vmatpush.bf16.msra.mxu0 0
        %933 = vmatpush.bf16.msra.mxu0 0
        %934 = vmatpush.bf16.msra.mxu0 0
        %935 = vmatpush.bf16.msra.mxu0 %v886
        %936 = vmatpush.bf16.msra.mxu0 %v884
        %937 = vmatmul.bf16.gmra.mxu0 %v924
        %v938 = vpop.f32.mrf.mxu0
        %v939 = vadd.f32 %v896, %v938
        %v940 = vpop.f32.mrf.mxu0
        %v941 = vadd.f32 %v901, %v940
        %942 = vmatmul.bf16.gmra.mxu0 %v927
        %v943 = vpop.f32.mrf.mxu0
        %v944 = vadd.f32 %v906, %v943
        %v945 = vpop.f32.mrf.mxu0
        %v946 = vadd.f32 %v911, %v945
        %947 = vdwg.mxu0
        %948 = vmatpush.bf16.msra.mxu0 0
        %949 = vmatpush.bf16.msra.mxu0 0
        %950 = vmatpush.bf16.msra.mxu0 0
        %951 = vmatpush.bf16.msra.mxu0 0
        %952 = vmatpush.bf16.msra.mxu0 0
        %953 = vmatpush.bf16.msra.mxu0 0
        %954 = vmatpush.bf16.msra.mxu0 %v887
        %955 = vmatpush.bf16.msra.mxu0 %v885
        %956 = vmatmul.bf16.gmra.mxu0 %v924
        %v957 = vpop.f32.mrf.mxu0
        %v958 = vadd.f32 %v896, %v957
        %v959 = vpop.f32.mrf.mxu0
        %v960 = vadd.f32 %v901, %v959
        %961 = vmatmul.bf16.gmra.mxu0 %v927
        %v962 = vpop.f32.mrf.mxu0
        %v963 = vadd.f32 %v906, %v962
        %v964 = vpop.f32.mrf.mxu0
        %v965 = vadd.f32 %v911, %v964
        %966 = vdwg.mxu0
        %v967 = vadd.f32 %v939, %v958
        %968 = vadd.xlane.f32.xlu0 %v967
        %v969 = vpop.xlane.xlu0 %968
        %v970 = vadd.f32 %v941, %v960
        %971 = vadd.xlane.f32.xlu0 %v970
        %v972 = vpop.xlane.xlu0 %971
        %v973 = vadd.f32 %v944, %v963
        %974 = vadd.xlane.f32.xlu0 %v973
        %v975 = vpop.xlane.xlu0 %974
        %v976 = vadd.f32 %v946, %v965
        %977 = vadd.xlane.f32.xlu0 %v976
        %v978 = vpop.xlane.xlu0 %977
        %v979 = vmul.f32 %v969, 0.00390625
        %v980 = vmul.f32 %v972, 0.00390625
        %v981 = vmul.f32 %v975, 0.00390625
        %v982 = vmul.f32 %v978, 0.00390625
        %s983 = scalar_lea.vmem %s5, 2
        %v984 = vld [vmem:[%s983] sm:$0x3]
        %s985 = scalar_lea.vmem %s6, 2
        %v986 = vld [vmem:[%s985] sm:$0x3]
        %v988 = vsel %vm436, %v984, 0
        %990 = vmatpush.msra.mxu0 0.0
        %991 = vmatpush.msra.mxu0 0.0
        %992 = vmatpush.msra.mxu0 0.0
        %993 = vmatpush.msra.mxu0 0.0
        %994 = vmatpush.msra.mxu0 0.0
        %995 = vmatpush.msra.mxu0 0.0
        %996 = vmatpush.msra.mxu0 0.0
        %997 = vmatpush.msra.mxu0 0.0
        %998 = vmatpush.msra.mxu0 0.0
        %999 = vmatpush.msra.mxu0 0.0
        %1000 = vmatpush.msra.mxu0 0.0
        %1001 = vmatpush.msra.mxu0 0.0
        %1002 = vmatpush.msra.mxu0 %v982
        %1003 = vmatpush.msra.mxu0 %v981
        %1004 = vmatpush.msra.mxu0 %v980
        %1005 = vmatpush.msra.mxu0 %v979
        %1006 = vmatmul.f32.gmra.mxu0 %v988
        %v1007 = vpop.f32.mrf.mxu0
        %v1008 = vadd.f32 %v986, %v1007
        %1009 = vdwg.mxu0
        %v1010 = vmax.f32 %v1008, 0.0
        %s1011 = scalar_lea.vmem %s7, 32
        %v1012 = vld [vmem:[%s1011] sm:$0xff]
        %v1013 = vld [vmem:[%s1011 + $0x8] sm:$0xff]
        %v1014 = vld [vmem:[%s1011 + $0x10] sm:$0xff]
        %v1015 = vld [vmem:[%s1011 + $0x18] sm:$0xff]
        %s1016 = scalar_lea.vmem %s8, 32
        %v1017 = vld [vmem:[%s1016] sm:$0xff]
        %v1018 = vld [vmem:[%s1016 + $0x8] sm:$0xff]
        %v1019 = vld [vmem:[%s1016 + $0x10] sm:$0xff]
        %v1020 = vld [vmem:[%s1016 + $0x18] sm:$0xff]
        %v1022 = vsel %vm625, %v1012, 0
        %v1025 = vsel %vm625, %v1013, 0
        %v1028 = vsel %vm625, %v1014, 0
        %v1031 = vsel %vm625, %v1015, 0
        %v1034 = vsel %vm638, %v1010, 0
        %1036 = vmatpush.msra.mxu0 0.0
        %1037 = vmatpush.msra.mxu0 0.0
        %1038 = vmatpush.msra.mxu0 0.0
        %1039 = vmatpush.msra.mxu0 0.0
        %1040 = vmatpush.msra.mxu0 0.0
        %1041 = vmatpush.msra.mxu0 0.0
        %1042 = vmatpush.msra.mxu0 0.0
        %1043 = vmatpush.msra.mxu0 0.0
        %1044 = vmatpush.msra.mxu0 0.0
        %1045 = vmatpush.msra.mxu0 0.0
        %1046 = vmatpush.msra.mxu0 0.0
        %1047 = vmatpush.msra.mxu0 0.0
        %1048 = vmatpush.msra.mxu0 0.0
        %1049 = vmatpush.msra.mxu0 0.0
        %1050 = vmatpush.msra.mxu0 0.0
        %1051 = vmatpush.msra.mxu0 %v1034
        %1052 = vmatmul.f32.gmra.mxu0 %v1022
        %v1053 = vpop.f32.mrf.mxu0
        %v1054 = vadd.f32 %v1017, %v1053
        %1055 = vmatmul.f32.gmra.mxu0 %v1025
        %v1056 = vpop.f32.mrf.mxu0
        %v1057 = vadd.f32 %v1018, %v1056
        %1058 = vmatmul.f32.gmra.mxu0 %v1028
        %v1059 = vpop.f32.mrf.mxu0
        %v1060 = vadd.f32 %v1019, %v1059
        %1061 = vmatmul.f32.gmra.mxu0 %v1031
        %v1062 = vpop.f32.mrf.mxu0
        %v1063 = vadd.f32 %v1020, %v1062
        %1064 = vdwg.mxu0
        %v1065 = vxor.u32 %v1054, 2147483648
        %v1066 = vxor.u32 %v1057, 2147483648
        %v1067 = vxor.u32 %v1060, 2147483648
        %v1068 = vxor.u32 %v1063, 2147483648
        %v1069 = vmul.f32 %v1065, 1.442695
        %v1070 = vpow.pop %v1069
        %v1071 = vmul.f32 %v1066, 1.442695
        %v1072 = vpow.pop %v1071
        %v1073 = vmul.f32 %v1067, 1.442695
        %v1074 = vpow.pop %v1073
        %v1075 = vmul.f32 %v1068, 1.442695
        %v1076 = vpow.pop %v1075
        %v1077 = vadd.f32 %v1070, 1.0
        %v1078 = vadd.f32 %v1072, 1.0
        %v1079 = vadd.f32 %v1074, 1.0
        %v1080 = vadd.f32 %v1076, 1.0
        %v1081 = vrcp.pop %v1077
        %v1082 = vmul.f32 %v1077, %v1081
        %v1083 = vsub.f32 1.0, %v1082
        %v1084 = vmul.f32 %v1081, %v1083
        %v1085 = vadd.f32 %v1081, %v1084
        %vm1086 = vweird.f32 %v1077
        %vm1087 = vweird.f32 %v1081
        %vm1088 = vmor %vm1086, %vm1087
        %v1089 = vsel %vm1088, %v1081, %v1085
        %v1090 = vand.u32 2147483647, %v1077
        %vm1091 = vcmp.eq.f32.partialorder %v1090, 8.507059e+37
        %v1092 = vand.u32 %v1077, 2147483648
        %v1093 = vor.u32 1.1754944e-38, %v1092
        %v1094 = vsel %vm1091, %v1093, %v1089
        %v1095 = vmul.f32 1.0, %v1094
        %v1096 = vrcp.pop %v1078
        %v1097 = vmul.f32 %v1078, %v1096
        %v1098 = vsub.f32 1.0, %v1097
        %v1099 = vmul.f32 %v1096, %v1098
        %v1100 = vadd.f32 %v1096, %v1099
        %vm1101 = vweird.f32 %v1078
        %vm1102 = vweird.f32 %v1096
        %vm1103 = vmor %vm1101, %vm1102
        %v1104 = vsel %vm1103, %v1096, %v1100
        %v1105 = vand.u32 2147483647, %v1078
        %vm1106 = vcmp.eq.f32.partialorder %v1105, 8.507059e+37
        %v1107 = vand.u32 %v1078, 2147483648
        %v1108 = vor.u32 1.1754944e-38, %v1107
        %v1109 = vsel %vm1106, %v1108, %v1104
        %v1110 = vmul.f32 1.0, %v1109
        %v1111 = vrcp.pop %v1079
        %v1112 = vmul.f32 %v1079, %v1111
        %v1113 = vsub.f32 1.0, %v1112
        %v1114 = vmul.f32 %v1111, %v1113
        %v1115 = vadd.f32 %v1111, %v1114
        %vm1116 = vweird.f32 %v1079
        %vm1117 = vweird.f32 %v1111
        %vm1118 = vmor %vm1116, %vm1117
        %v1119 = vsel %vm1118, %v1111, %v1115
        %v1120 = vand.u32 2147483647, %v1079
        %vm1121 = vcmp.eq.f32.partialorder %v1120, 8.507059e+37
        %v1122 = vand.u32 %v1079, 2147483648
        %v1123 = vor.u32 1.1754944e-38, %v1122
        %v1124 = vsel %vm1121, %v1123, %v1119
        %v1125 = vmul.f32 1.0, %v1124
        %v1126 = vrcp.pop %v1080
        %v1127 = vmul.f32 %v1080, %v1126
        %v1128 = vsub.f32 1.0, %v1127
        %v1129 = vmul.f32 %v1126, %v1128
        %v1130 = vadd.f32 %v1126, %v1129
        %vm1131 = vweird.f32 %v1080
        %vm1132 = vweird.f32 %v1126
        %vm1133 = vmor %vm1131, %vm1132
        %v1134 = vsel %vm1133, %v1126, %v1130
        %v1135 = vand.u32 2147483647, %v1080
        %vm1136 = vcmp.eq.f32.partialorder %v1135, 8.507059e+37
        %v1137 = vand.u32 %v1080, 2147483648
        %v1138 = vor.u32 1.1754944e-38, %v1137
        %v1139 = vsel %vm1136, %v1138, %v1134
        %v1140 = vmul.f32 1.0, %v1139
        %1142 = vset.pattern.permute.xlu0 0
        %1143 = vperm.xlu0 %1142, %v1095
        %v1144 = vpop.permute.xlu0 %1143
        %1147 = vset.pattern.permute.xlu0 0
        %1148 = vperm.xlu0 %1147, %v1110
        %v1149 = vpop.permute.xlu0 %1148
        %1152 = vset.pattern.permute.xlu0 0
        %1153 = vperm.xlu0 %1152, %v1125
        %v1154 = vpop.permute.xlu0 %1153
        %1157 = vset.pattern.permute.xlu0 0
        %1158 = vperm.xlu0 %1157, %v1140
        %v1159 = vpop.permute.xlu0 %1158
        %v1161 = vmul.f32 %v939, %v1144
        %v1162 = vmul.f32 %v958, %v1144
        %v1163 = vmul.f32 %v941, %v1149
        %v1164 = vmul.f32 %v960, %v1149
        %v1165 = vmul.f32 %v944, %v1154
        %v1166 = vmul.f32 %v963, %v1154
        %v1167 = vmul.f32 %v946, %v1159
        %v1168 = vmul.f32 %v965, %v1159
        %v1169 = vadd.f32 %v1161, %v775
        %v1170 = vadd.f32 %v1162, %v776
        %v1171 = vadd.f32 %v1163, %v777
        %v1172 = vadd.f32 %v1164, %v778
        %v1173 = vadd.f32 %v1165, %v779
        %v1174 = vadd.f32 %v1166, %v780
        %v1175 = vadd.f32 %v1167, %v781
        %v1176 = vadd.f32 %v1168, %v782
        %v1177 = vld [vmem:[%s9] sm:$0xf]
        %v1178 = vld [vmem:[%s9 + $0x4] sm:$0xf]
        %v1179 = vld [vmem:[%s9 + $0x8] sm:$0xf]
        %v1180 = vld [vmem:[%s9 + $0xc] sm:$0xf]
        %v1181 = vpack.c.bf16 %v1171, %v1169
        %v1182 = vpack.c.bf16 %v1172, %v1170
        %v1183 = vpack.c.bf16 %v1175, %v1173
        %v1184 = vpack.c.bf16 %v1176, %v1174
        %v1185 = vld [vmem:[%s10] sm:$0xff]
        %v1186 = vld [vmem:[%s10 + $0x8] sm:$0xff]
        %v1187 = vld [vmem:[%s10 + $0x10] sm:$0xff]
        %v1188 = vld [vmem:[%s10 + $0x18] sm:$0xff]
        %1190 = vset.pattern.permute.xlu0 0
        %1191 = vperm.xlu0 %1190, %v1185
        %v1192 = vpop.permute.xlu0 %1191
        %1195 = vset.pattern.permute.xlu0 0
        %1196 = vperm.xlu0 %1195, %v1186
        %v1197 = vpop.permute.xlu0 %1196
        %1200 = vset.pattern.permute.xlu0 0
        %1201 = vperm.xlu0 %1200, %v1187
        %v1202 = vpop.permute.xlu0 %1201
        %1205 = vset.pattern.permute.xlu0 0
        %1206 = vperm.xlu0 %1205, %v1188
        %v1207 = vpop.permute.xlu0 %1206
        %v1213 = vunpack.c.l.b16 %v1177
        %v1214 = vunpack.c.l.b16 %v1178
        %v1215 = vunpack.c.l.b16 %v1179
        %v1216 = vunpack.c.l.b16 %v1180
        %v1217 = vpack.c.b16 %v1214, %v1213
        %v1218 = vpack.c.b16 %v1216, %v1215
        %v1220 = vsel %vm436, %v1217, 0
        %v1223 = vsel %vm436, %v1218, 0
        %1225 = vmatpush.bf16.msra.mxu0 0
        %1226 = vmatpush.bf16.msra.mxu0 0
        %1227 = vmatpush.bf16.msra.mxu0 0
        %1228 = vmatpush.bf16.msra.mxu0 0
        %1229 = vmatpush.bf16.msra.mxu0 0
        %1230 = vmatpush.bf16.msra.mxu0 0
        %1231 = vmatpush.bf16.msra.mxu0 %v1183
        %1232 = vmatpush.bf16.msra.mxu0 %v1181
        %1233 = vmatmul.bf16.gmra.mxu0 %v1220
        %v1234 = vpop.f32.mrf.mxu0
        %v1235 = vadd.f32 %v1192, %v1234
        %v1236 = vpop.f32.mrf.mxu0
        %v1237 = vadd.f32 %v1197, %v1236
        %1238 = vmatmul.bf16.gmra.mxu0 %v1223
        %v1239 = vpop.f32.mrf.mxu0
        %v1240 = vadd.f32 %v1202, %v1239
        %v1241 = vpop.f32.mrf.mxu0
        %v1242 = vadd.f32 %v1207, %v1241
        %1243 = vdwg.mxu0
        %1244 = vmatpush.bf16.msra.mxu0 0
        %1245 = vmatpush.bf16.msra.mxu0 0
        %1246 = vmatpush.bf16.msra.mxu0 0
        %1247 = vmatpush.bf16.msra.mxu0 0
        %1248 = vmatpush.bf16.msra.mxu0 0
        %1249 = vmatpush.bf16.msra.mxu0 0
        %1250 = vmatpush.bf16.msra.mxu0 %v1184
        %1251 = vmatpush.bf16.msra.mxu0 %v1182
        %1252 = vmatmul.bf16.gmra.mxu0 %v1220
        %v1253 = vpop.f32.mrf.mxu0
        %v1254 = vadd.f32 %v1192, %v1253
        %v1255 = vpop.f32.mrf.mxu0
        %v1256 = vadd.f32 %v1197, %v1255
        %1257 = vmatmul.bf16.gmra.mxu0 %v1223
        %v1258 = vpop.f32.mrf.mxu0
        %v1259 = vadd.f32 %v1202, %v1258
        %v1260 = vpop.f32.mrf.mxu0
        %v1261 = vadd.f32 %v1207, %v1260
        %1262 = vdwg.mxu0
        %v1263 = vadd.f32 %v386, %v1235
        %v1264 = vadd.f32 %v387, %v1254
        %v1265 = vadd.f32 %v388, %v1237
        %v1266 = vadd.f32 %v389, %v1256
        %v1267 = vadd.f32 %v390, %v1240
        %v1268 = vadd.f32 %v391, %v1259
        %v1269 = vadd.f32 %v392, %v1242
        %v1270 = vadd.f32 %v393, %v1261
        %1271 = vst [vmem:[%s379] sm:$0xff] %v1263
        %1272 = vst [vmem:[%s379 + $0x8] sm:$0xff] %v1264
        %1273 = vst [vmem:[%s379 + $0x10] sm:$0xff] %v1265
        %1274 = vst [vmem:[%s379 + $0x18] sm:$0xff] %v1266
        %1275 = vst [vmem:[%s379 + $0x20] sm:$0xff] %v1267
        %1276 = vst [vmem:[%s379 + $0x28] sm:$0xff] %v1268
        %1277 = vst [vmem:[%s379 + $0x30] sm:$0xff] %v1269
        %1278 = vst [vmem:[%s379 + $0x38] sm:$0xff] %v1270
        %s1279 = sand.u32 %s269, 1
        %s1280 = scalar_lea.sflag [#allocation3], %s1279
        %s1281 = sand.u32 %s269, 1
        %s1282 = smul.addr %s1281, 64
        %s1283 = scalar_lea.vmem [#allocation2], %s1282
        // Predicated region
        $region65: #{tpu_custom_call.1} parent=63 // pred_check
          %p1284 = pneg %p279
        $region66: #{tpu_custom_call.1} parent=63 // pred_check_branch
          %1286 = sbr.rel (%p1284) target = $region68
        $region67: #{tpu_custom_call.1} parent=63 // pred_region
          %1288 = vsyncadd %s1280, 0
          %s1289 = smul.addr %s25, 8
          %s1290 = smul.addr %s1289, 8
          %s1291 = scalar_lea.hbm %s11, %s1290
          %s1292 = sshll.u32 %s1283, 4
          %s1293 = int_to_ptr.vmem [resolvable:$true] %s1292
          %s1294 = sshll.u32 %s1291, 4
          %s1295 = int_to_ptr.hbm [resolvable:$true] %s1294
          %1300 = dma.vmem_to_hbm [thread:$0]  %s1293, 1024, %s1295, %s1280, 256, 256, 16
        $region68: #{tpu_custom_call.1} parent=63 // pred_fallthru
          _
      $region64: #{tpu_custom_call.1} parent=5 // pred_fallthru
        _
      %p1301 = scmp.le.s32.totalorder 2, %s20
      // Predicated region
      $region69: #{tpu_custom_call.1} parent=5 // pred_check
        %p1302 = pneg %p1301
      $region70: #{tpu_custom_call.1} parent=5 // pred_check_branch
        %1304 = sbr.rel (%p1302) target = $region72
      $region71: #{tpu_custom_call.1} parent=5 // pred_region
        %s1305 = ssub.s32 %s20, 2
        // Predicated region
        $region73: #{tpu_custom_call.1} parent=71 // pred_check
          %p1306 = pneg %p285
        $region74: #{tpu_custom_call.1} parent=71 // pred_check_branch
          %1308 = sbr.rel (%p1306) target = $region76
        $region75: #{tpu_custom_call.1} parent=71 // pred_region
          %s1309 = sand.u32 %s270, 1
          %s1310 = scalar_lea.sflag [#allocation3], %s1309
          %s1311 = sand.u32 %s270, 1
          %s1312 = smul.addr %s1311, 64
          %s1313 = scalar_lea.vmem [#allocation2], %s1312
          %1315 = dma.done %s1310, 1024
        $region76: #{tpu_custom_call.1} parent=71 // pred_fallthru
          _
      $region72: #{tpu_custom_call.1} parent=5 // pred_fallthru
        _
    $region6: #{tpu_custom_call.1} parent=1 // loop_footer
      %s24 = sadd.s32 1, %s20
    $region7: #{tpu_custom_call.1} parent=1 // loop_footer_branch
      %19 = sbr.rel target = $region3
    $region8: #{tpu_custom_call.1} parent=1 // loop_exit
      _
    %1316 = vsyncpa [#allocation3], 1
    %s1317 = scalar_lea.sflag [#allocation3], 1
    %1318 = vsyncpa %s1317, 1

</llo_original>
